<compile_context>
chip_gen: v5e
topology: v5e:2x2
jax: 0.10.0
libtpu: 0.0.40
codegen_flags: <defaults>
</compile_context>

<pallas_src>
import functools

import jax
import jax.numpy as jnp
from jax.experimental import pallas as pl
from jax.experimental.pallas import tpu as pltpu

LN_EPS = 1e-5     # PyTorch nn.LayerNorm default
D_REAL = 100      # true hidden width of the PyTorch module
HPAD = 128        # lane-padded hidden width used inside the kernel


# --------------------------------- kernel -----------------------------------
def _layernorm_padded(h, g, b):
    """LayerNorm over the first D_REAL lanes of a (rows, HPAD) tile.

    Lanes >= D_REAL of `h` are exactly zero by construction (zero-padded
    weights / biases), so sum(h)/D_REAL and sum(h*h)/D_REAL are the true mean
    and E[x^2] over the 100 real features.  gamma/beta are zero-padded, so the
    padded lanes of the result stay exactly zero.
    """
    mu = jnp.sum(h, axis=-1, keepdims=True) * (1.0 / D_REAL)
    ms = jnp.sum(h * h, axis=-1, keepdims=True) * (1.0 / D_REAL)
    var = ms - mu * mu
    return (h - mu) * jax.lax.rsqrt(var + LN_EPS) * g + b


def _mm(a, w):
    # Matmul in the weight's dtype (bf16 for the heavy point-wise layers on
    # v6e/v7x), always accumulating in f32 on the MXU.
    return jnp.dot(a.astype(w.dtype), w, preferred_element_type=jnp.float32)


def encoder_kernel(x_ref, pos_ref,
                   w1x, w1p, b1, g1, be1,
                   w2, b2, g2, be2,
                   w3, b3,
                   w4, b4, g4, be4,
                   w5, b5, g5, be5,
                   w6, b6,
                   out_ref, acc_ref, *, n_points, tn):
    k = pl.program_id(1)

    @pl.when(k == 0)
    def _init():
        acc_ref[...] = jnp.zeros_like(acc_ref)

    # ---- nn1 (point-wise MLP) on one (TN, .) tile of points ----------------
    # layer 1: split-K matmul  ==  concat([x, pos], -1) @ w1
    h = (jnp.dot(x_ref[...], w1x[...], preferred_element_type=jnp.float32)
         + jnp.dot(pos_ref[...], w1p[...], preferred_element_type=jnp.float32)
         + b1[...])
    h = jnp.maximum(_layernorm_padded(h, g1[...], be1[...]), 0.0)
    h = _mm(h, w2[...]) + b2[...]
    h = jnp.maximum(_layernorm_padded(h, g2[...], be2[...]), 0.0)
    h = _mm(h, w3[...]) + b3[...]

    # ---- accumulate per-batch sum over points (mean pooling) ---------------
    if n_points % tn != 0:  # mask rows past the true point count (last tile)
        row = k * tn + jax.lax.broadcasted_iota(jnp.int32, h.shape, 0)
        h = jnp.where(row < n_points, h, 0.0)
    acc_ref[...] += jnp.sum(h, axis=0, keepdims=True)

    # ---- nn2 + output write on the last point tile of this batch -----------
    @pl.when(k == pl.num_programs(1) - 1)
    def _epilogue():
        p = acc_ref[...] * (1.0 / n_points)           # (1, HPAD) pooled mean
        p = _mm(p, w4[...]) + b4[...]
        p = jnp.maximum(_layernorm_padded(p, g4[...], be4[...]), 0.0)
        p = _mm(p, w5[...]) + b5[...]
        p = jnp.maximum(_layernorm_padded(p, g5[...], be5[...]), 0.0)
        out_ref[...] = _mm(p, w6[...]) + b6[...]


# --------------------------------- wrapper ----------------------------------
def _pad2(a, rows, cols):
    r, c = a.shape
    return jnp.pad(jnp.asarray(a, jnp.float32), ((0, rows - r), (0, cols - c)))


def encoder_forward(x, pos, params, *, use_bf16=True, point_tile=1024):
    """Pallas forward pass of Encoder; returns (B, 5) float32."""
    B, N, _ = x.shape
    (w1, b1, g1, be1, w2, b2, g2, be2, w3, b3,
     w4, b4, g4, be4, w5, b5, g5, be5, w6, b6) = params

    TN = N if N <= point_tile else point_tile        # point-tile size
    kt = pl.cdiv(N, TN)
    mm_dtype = jnp.bfloat16 if use_bf16 else jnp.float32

    # zero-pad weights / vectors from width 100 to the lane-dense 128
    w1 = jnp.asarray(w1, jnp.float32)
    weights = [
        _pad2(w1[:3], 3, HPAD),                      # w1x (x @ w1[:3])
        _pad2(w1[3:], 3, HPAD),                      # w1p (pos @ w1[3:])
        _pad2(b1, 1, HPAD), _pad2(g1, 1, HPAD), _pad2(be1, 1, HPAD),
        _pad2(w2, HPAD, HPAD).astype(mm_dtype),      # heavy point-wise layer
        _pad2(b2, 1, HPAD), _pad2(g2, 1, HPAD), _pad2(be2, 1, HPAD),
        _pad2(w3, HPAD, HPAD).astype(mm_dtype),      # heavy point-wise layer
        _pad2(b3, 1, HPAD),
        _pad2(w4, HPAD, HPAD), _pad2(b4, 1, HPAD),
        _pad2(g4, 1, HPAD), _pad2(be4, 1, HPAD),
        _pad2(w5, HPAD, HPAD), _pad2(b5, 1, HPAD),
        _pad2(g5, 1, HPAD), _pad2(be5, 1, HPAD),
        _pad2(w6, HPAD, HPAD), _pad2(b6, 1, HPAD),
    ]

    point_spec = pl.BlockSpec((None, TN, 3), lambda b, k: (b, k, 0))

    def const_spec(p):   # weights stay VMEM-resident across the whole grid
        return pl.BlockSpec(p.shape, lambda b, k: (0, 0))

    grid_spec = pltpu.PrefetchScalarGridSpec(
        num_scalar_prefetch=0,
        grid=(B, kt),                                # batch outer, points inner
        in_specs=[point_spec, point_spec] + [const_spec(p) for p in weights],
        out_specs=pl.BlockSpec((None, 1, HPAD), lambda b, k: (b, 0, 0)),
        scratch_shapes=[pltpu.VMEM((1, HPAD), jnp.float32)],  # pooling acc
    )

    out = pl.pallas_call(
        functools.partial(encoder_kernel, n_points=N, tn=TN),
        out_shape=jax.ShapeDtypeStruct((B, 1, HPAD), jnp.float32),
        grid_spec=grid_spec,
        compiler_params=pltpu.CompilerParams(
            dimension_semantics=("parallel", "arbitrary"),
            vmem_limit_bytes=32 * 1024 * 1024,
        ),
    )(x, pos, *weights)

    return out[:, 0, :5]                             # drop the lane padding


# ----------------------- deterministic parameter init -----------------------
def _init_linear(key, fan_in, fan_out):
    kw, kb = jax.random.split(key)
    bound = 1.0 / float(fan_in) ** 0.5
    w = jax.random.uniform(kw, (fan_in, fan_out), jnp.float32, -bound, bound)
    b = jax.random.uniform(kb, (1, fan_out), jnp.float32, -bound, bound)
    return w, b


def make_params(key):
    ks = jax.random.split(key, 6)
    ones = lambda d: jnp.ones((1, d), jnp.float32)
    zeros = lambda d: jnp.zeros((1, d), jnp.float32)
    w1, b1 = _init_linear(ks[0], 6, 100)
    w2, b2 = _init_linear(ks[1], 100, 100)
    w3, b3 = _init_linear(ks[2], 100, 100)
    w4, b4 = _init_linear(ks[3], 100, 100)
    w5, b5 = _init_linear(ks[4], 100, 100)
    w6, b6 = _init_linear(ks[5], 100, 5)
    return [w1, b1, ones(100), zeros(100),
            w2, b2, ones(100), zeros(100),
            w3, b3,
            w4, b4, ones(100), zeros(100),
            w5, b5, ones(100), zeros(100),
            w6, b6]


# ------------------------------ pure-JAX reference ---------------------------
def _layernorm_ref(h, g, b):
    mu = jnp.mean(h, axis=-1, keepdims=True)
    var = jnp.mean((h - mu) ** 2, axis=-1, keepdims=True)
    return (h - mu) * jax.lax.rsqrt(var + LN_EPS) * g + b


def encoder_ref(x, pos, params):
    (w1, b1, g1, be1, w2, b2, g2, be2, w3, b3,
     w4, b4, g4, be4, w5, b5, g5, be5, w6, b6) = params
    B, N, _ = x.shape
    h = jnp.concatenate([x, pos], axis=2).reshape(-1, 6)
    h = jnp.maximum(_layernorm_ref(h @ w1 + b1, g1, be1), 0.0)
    h = jnp.maximum(_layernorm_ref(h @ w2 + b2, g2, be2), 0.0)
    h = h @ w3 + b3
    h = h.reshape(B, N, 100).mean(axis=1)
    h = jnp.maximum(_layernorm_ref(h @ w4 + b4, g4, be4), 0.0)
    h = jnp.maximum(_layernorm_ref(h @ w5 + b5, g5, be5), 0.0)
    return h @ w6 + b6


if __name__ == "__main__":
    B, N = 2, 8  # small stand-ins for BATCH_SIZE=20, len(points)
    key = jax.random.PRNGKey(0)
    kx, kp, kw = jax.random.split(key, 3)
    x = jax.random.normal(kx, (B, N, 3), jnp.float32)
    pos = jax.random.normal(kp, (B, N, 3), jnp.float32)
    params = make_params(kw)

    ref = encoder_ref(x, pos, params)

    # f32 path: exact-semantics check against the pure-JAX reference.
    out_f32 = jax.block_until_ready(encoder_forward(x, pos, params, use_bf16=False))
    assert out_f32.shape == (B, 5)
    assert jnp.allclose(out_f32, ref, atol=2e-4, rtol=2e-4)

    # bf16 point-wise layers (v6e/v7x fast path), f32 accumulation.
    out_bf16 = jax.block_until_ready(encoder_forward(x, pos, params, use_bf16=True))
    assert out_bf16.shape == (B, 5)
    assert jnp.allclose(out_bf16, ref, atol=5e-2, rtol=5e-2)

    print("KERNEL_OK")
</pallas_src>

<mosaic_0001>
module attributes {stable_mosaic.version = 11 : i64} {
  func.func @encoder_kernel(%arg0: i32, %arg1: i32, %arg2: memref<1x8x3xf32, #tpu.memory_space<vmem>>, %arg3: memref<1x8x3xf32, #tpu.memory_space<vmem>>, %arg4: memref<3x128xf32, #tpu.memory_space<vmem>>, %arg5: memref<3x128xf32, #tpu.memory_space<vmem>>, %arg6: memref<1x128xf32, #tpu.memory_space<vmem>>, %arg7: memref<1x128xf32, #tpu.memory_space<vmem>>, %arg8: memref<1x128xf32, #tpu.memory_space<vmem>>, %arg9: memref<128x128xf32, #tpu.memory_space<vmem>>, %arg10: memref<1x128xf32, #tpu.memory_space<vmem>>, %arg11: memref<1x128xf32, #tpu.memory_space<vmem>>, %arg12: memref<1x128xf32, #tpu.memory_space<vmem>>, %arg13: memref<128x128xf32, #tpu.memory_space<vmem>>, %arg14: memref<1x128xf32, #tpu.memory_space<vmem>>, %arg15: memref<128x128xf32, #tpu.memory_space<vmem>>, %arg16: memref<1x128xf32, #tpu.memory_space<vmem>>, %arg17: memref<1x128xf32, #tpu.memory_space<vmem>>, %arg18: memref<1x128xf32, #tpu.memory_space<vmem>>, %arg19: memref<128x128xf32, #tpu.memory_space<vmem>>, %arg20: memref<1x128xf32, #tpu.memory_space<vmem>>, %arg21: memref<1x128xf32, #tpu.memory_space<vmem>>, %arg22: memref<1x128xf32, #tpu.memory_space<vmem>>, %arg23: memref<128x128xf32, #tpu.memory_space<vmem>>, %arg24: memref<1x128xf32, #tpu.memory_space<vmem>>, %arg25: memref<1x1x128xf32, #tpu.memory_space<vmem>>, %arg26: memref<1x128xf32, #tpu.memory_space<vmem>>) attributes {dimension_semantics = [#tpu.dimension_semantics<parallel>, #tpu.dimension_semantics<arbitrary>], iteration_bounds = array<i64: 2, 1>, scalar_prefetch = 0 : i64, scratch_operands = 1 : i64, tpu.core_type = #tpu.core_type<tc>, window_params = [{transform_indices = @transform_0, window_bounds = array<i64: 1, 8, 3>}, {transform_indices = @transform_1, window_bounds = array<i64: 1, 8, 3>}, {pipeline_mode = #tpu.pipeline_mode<synchronous>, transform_indices = @transform_2, window_bounds = array<i64: 3, 128>}, {pipeline_mode = #tpu.pipeline_mode<synchronous>, transform_indices = @transform_3, window_bounds = array<i64: 3, 128>}, {pipeline_mode = #tpu.pipeline_mode<synchronous>, transform_indices = @transform_4, window_bounds = array<i64: 1, 128>}, {pipeline_mode = #tpu.pipeline_mode<synchronous>, transform_indices = @transform_5, window_bounds = array<i64: 1, 128>}, {pipeline_mode = #tpu.pipeline_mode<synchronous>, transform_indices = @transform_6, window_bounds = array<i64: 1, 128>}, {pipeline_mode = #tpu.pipeline_mode<synchronous>, transform_indices = @transform_7, window_bounds = array<i64: 128, 128>}, {pipeline_mode = #tpu.pipeline_mode<synchronous>, transform_indices = @transform_8, window_bounds = array<i64: 1, 128>}, {pipeline_mode = #tpu.pipeline_mode<synchronous>, transform_indices = @transform_9, window_bounds = array<i64: 1, 128>}, {pipeline_mode = #tpu.pipeline_mode<synchronous>, transform_indices = @transform_10, window_bounds = array<i64: 1, 128>}, {pipeline_mode = #tpu.pipeline_mode<synchronous>, transform_indices = @transform_11, window_bounds = array<i64: 128, 128>}, {pipeline_mode = #tpu.pipeline_mode<synchronous>, transform_indices = @transform_12, window_bounds = array<i64: 1, 128>}, {pipeline_mode = #tpu.pipeline_mode<synchronous>, transform_indices = @transform_13, window_bounds = array<i64: 128, 128>}, {pipeline_mode = #tpu.pipeline_mode<synchronous>, transform_indices = @transform_14, window_bounds = array<i64: 1, 128>}, {pipeline_mode = #tpu.pipeline_mode<synchronous>, transform_indices = @transform_15, window_bounds = array<i64: 1, 128>}, {pipeline_mode = #tpu.pipeline_mode<synchronous>, transform_indices = @transform_16, window_bounds = array<i64: 1, 128>}, {pipeline_mode = #tpu.pipeline_mode<synchronous>, transform_indices = @transform_17, window_bounds = array<i64: 128, 128>}, {pipeline_mode = #tpu.pipeline_mode<synchronous>, transform_indices = @transform_18, window_bounds = array<i64: 1, 128>}, {pipeline_mode = #tpu.pipeline_mode<synchronous>, transform_indices = @transform_19, window_bounds = array<i64: 1, 128>}, {pipeline_mode = #tpu.pipeline_mode<synchronous>, transform_indices = @transform_20, window_bounds = array<i64: 1, 128>}, {pipeline_mode = #tpu.pipeline_mode<synchronous>, transform_indices = @transform_21, window_bounds = array<i64: 128, 128>}, {pipeline_mode = #tpu.pipeline_mode<synchronous>, transform_indices = @transform_22, window_bounds = array<i64: 1, 128>}, {transform_indices = @transform_23, window_bounds = array<i64: 1, 1, 128>}]} {
    %c0_i32 = arith.constant 0 : i32
    %0 = arith.cmpi eq, %arg1, %c0_i32 : i32
    %1 = arith.extui %0 : i1 to i32
    %c0_i32_0 = arith.constant 0 : i32
    %2 = arith.cmpi ne, %1, %c0_i32_0 : i32
    scf.if %2 {
      %cst_50 = arith.constant 0.000000e+00 : f32
      %85 = vector.broadcast %cst_50 : f32 to vector<1x128xf32>
      %c0_51 = arith.constant 0 : index
      %c0_52 = arith.constant 0 : index
      %86 = vector.load %arg26[%c0_51, %c0_52] : memref<1x128xf32, #tpu.memory_space<vmem>>, vector<1x128xf32>
      tpu.vector_store %arg26[%c0_51, %c0_52], %85 {strides = array<i32>} : memref<1x128xf32, #tpu.memory_space<vmem>>, vector<1x128xf32>,
    } else {
    }
    %c0 = arith.constant 0 : index
    %c0_1 = arith.constant 0 : index
    %c0_2 = arith.constant 0 : index
    %3 = vector.load %arg2[%c0, %c0_1, %c0_2] : memref<1x8x3xf32, #tpu.memory_space<vmem>>, vector<1x8x3xf32>
    %4 = vector.shape_cast %3 : vector<1x8x3xf32> to vector<8x3xf32>
    %c0_3 = arith.constant 0 : index
    %c0_4 = arith.constant 0 : index
    %5 = vector.load %arg4[%c0_3, %c0_4] : memref<3x128xf32, #tpu.memory_space<vmem>>, vector<3x128xf32>
    %cst = arith.constant dense<0.000000e+00> : vector<8x128xf32>
    %6 = tpu.matmul %4, %5, %cst {dimension_numbers = #tpu.dot_dimension_numbers<[1], [0], [0], [1], [0, 0, 1, 1], [], []>} : vector<8x3xf32>, vector<3x128xf32>, vector<8x128xf32> -> vector<8x128xf32>
    %c0_5 = arith.constant 0 : index
    %c0_6 = arith.constant 0 : index
    %c0_7 = arith.constant 0 : index
    %7 = vector.load %arg3[%c0_5, %c0_6, %c0_7] : memref<1x8x3xf32, #tpu.memory_space<vmem>>, vector<1x8x3xf32>
    %8 = vector.shape_cast %7 : vector<1x8x3xf32> to vector<8x3xf32>
    %c0_8 = arith.constant 0 : index
    %c0_9 = arith.constant 0 : index
    %9 = vector.load %arg5[%c0_8, %c0_9] : memref<3x128xf32, #tpu.memory_space<vmem>>, vector<3x128xf32>
    %cst_10 = arith.constant dense<0.000000e+00> : vector<8x128xf32>
    %10 = tpu.matmul %8, %9, %cst_10 {dimension_numbers = #tpu.dot_dimension_numbers<[1], [0], [0], [1], [0, 0, 1, 1], [], []>} : vector<8x3xf32>, vector<3x128xf32>, vector<8x128xf32> -> vector<8x128xf32>
    %11 = arith.addf %6, %10 : vector<8x128xf32>
    %c0_11 = arith.constant 0 : index
    %c0_12 = arith.constant 0 : index
    %12 = vector.load %arg6[%c0_11, %c0_12] : memref<1x128xf32, #tpu.memory_space<vmem>>, vector<1x128xf32>
    %13 = vector.broadcast %12 : vector<1x128xf32> to vector<8x128xf32>
    %14 = arith.addf %11, %13 : vector<8x128xf32>
    %c0_13 = arith.constant 0 : index
    %c0_14 = arith.constant 0 : index
    %15 = vector.load %arg7[%c0_13, %c0_14] : memref<1x128xf32, #tpu.memory_space<vmem>>, vector<1x128xf32>
    %c0_15 = arith.constant 0 : index
    %c0_16 = arith.constant 0 : index
    %16 = vector.load %arg8[%c0_15, %c0_16] : memref<1x128xf32, #tpu.memory_space<vmem>>, vector<1x128xf32>
    %cst_17 = arith.constant dense<0.000000e+00> : vector<8xf32>
    %17 = vector.multi_reduction <add>, %14, %cst_17 [1] : vector<8x128xf32> to vector<8xf32>
    %18 = vector.shape_cast %17 : vector<8xf32> to vector<8x1xf32>
    %cst_18 = arith.constant 0.00999999977 : f32
    %19 = vector.broadcast %cst_18 : f32 to vector<8x1xf32>
    %20 = arith.mulf %18, %19 : vector<8x1xf32>
    %21 = arith.mulf %14, %14 : vector<8x128xf32>
    %cst_19 = arith.constant dense<0.000000e+00> : vector<8xf32>
    %22 = vector.multi_reduction <add>, %21, %cst_19 [1] : vector<8x128xf32> to vector<8xf32>
    %23 = vector.shape_cast %22 : vector<8xf32> to vector<8x1xf32>
    %cst_20 = arith.constant 0.00999999977 : f32
    %24 = vector.broadcast %cst_20 : f32 to vector<8x1xf32>
    %25 = arith.mulf %23, %24 : vector<8x1xf32>
    %26 = arith.mulf %20, %20 : vector<8x1xf32>
    %27 = arith.subf %25, %26 : vector<8x1xf32>
    %28 = vector.broadcast %20 : vector<8x1xf32> to vector<8x128xf32>
    %29 = arith.subf %14, %28 : vector<8x128xf32>
    %cst_21 = arith.constant 9.99999974E-6 : f32
    %30 = vector.broadcast %cst_21 : f32 to vector<8x1xf32>
    %31 = arith.addf %27, %30 : vector<8x1xf32>
    %32 = math.rsqrt %31 : vector<8x1xf32>
    %33 = vector.broadcast %32 : vector<8x1xf32> to vector<8x128xf32>
    %34 = arith.mulf %29, %33 : vector<8x128xf32>
    %35 = vector.broadcast %15 : vector<1x128xf32> to vector<8x128xf32>
    %36 = arith.mulf %34, %35 : vector<8x128xf32>
    %37 = vector.broadcast %16 : vector<1x128xf32> to vector<8x128xf32>
    %38 = arith.addf %36, %37 : vector<8x128xf32>
    %cst_22 = arith.constant 0.000000e+00 : f32
    %39 = vector.broadcast %cst_22 : f32 to vector<8x128xf32>
    %40 = arith.maximumf %38, %39 : vector<8x128xf32>
    %c0_23 = arith.constant 0 : index
    %c0_24 = arith.constant 0 : index
    %41 = vector.load %arg9[%c0_23, %c0_24] : memref<128x128xf32, #tpu.memory_space<vmem>>, vector<128x128xf32>
    %cst_25 = arith.constant dense<0.000000e+00> : vector<8x128xf32>
    %42 = tpu.matmul %40, %41, %cst_25 {dimension_numbers = #tpu.dot_dimension_numbers<[1], [0], [0], [1], [0, 0, 1, 1], [], []>} : vector<8x128xf32>, vector<128x128xf32>, vector<8x128xf32> -> vector<8x128xf32>
    %c0_26 = arith.constant 0 : index
    %c0_27 = arith.constant 0 : index
    %43 = vector.load %arg10[%c0_26, %c0_27] : memref<1x128xf32, #tpu.memory_space<vmem>>, vector<1x128xf32>
    %44 = vector.broadcast %43 : vector<1x128xf32> to vector<8x128xf32>
    %45 = arith.addf %42, %44 : vector<8x128xf32>
    %c0_28 = arith.constant 0 : index
    %c0_29 = arith.constant 0 : index
    %46 = vector.load %arg11[%c0_28, %c0_29] : memref<1x128xf32, #tpu.memory_space<vmem>>, vector<1x128xf32>
    %c0_30 = arith.constant 0 : index
    %c0_31 = arith.constant 0 : index
    %47 = vector.load %arg12[%c0_30, %c0_31] : memref<1x128xf32, #tpu.memory_space<vmem>>, vector<1x128xf32>
    %cst_32 = arith.constant dense<0.000000e+00> : vector<8xf32>
    %48 = vector.multi_reduction <add>, %45, %cst_32 [1] : vector<8x128xf32> to vector<8xf32>
    %49 = vector.shape_cast %48 : vector<8xf32> to vector<8x1xf32>
    %cst_33 = arith.constant 0.00999999977 : f32
    %50 = vector.broadcast %cst_33 : f32 to vector<8x1xf32>
    %51 = arith.mulf %49, %50 : vector<8x1xf32>
    %52 = arith.mulf %45, %45 : vector<8x128xf32>
    %cst_34 = arith.constant dense<0.000000e+00> : vector<8xf32>
    %53 = vector.multi_reduction <add>, %52, %cst_34 [1] : vector<8x128xf32> to vector<8xf32>
    %54 = vector.shape_cast %53 : vector<8xf32> to vector<8x1xf32>
    %cst_35 = arith.constant 0.00999999977 : f32
    %55 = vector.broadcast %cst_35 : f32 to vector<8x1xf32>
    %56 = arith.mulf %54, %55 : vector<8x1xf32>
    %57 = arith.mulf %51, %51 : vector<8x1xf32>
    %58 = arith.subf %56, %57 : vector<8x1xf32>
    %59 = vector.broadcast %51 : vector<8x1xf32> to vector<8x128xf32>
    %60 = arith.subf %45, %59 : vector<8x128xf32>
    %cst_36 = arith.constant 9.99999974E-6 : f32
    %61 = vector.broadcast %cst_36 : f32 to vector<8x1xf32>
    %62 = arith.addf %58, %61 : vector<8x1xf32>
    %63 = math.rsqrt %62 : vector<8x1xf32>
    %64 = vector.broadcast %63 : vector<8x1xf32> to vector<8x128xf32>
    %65 = arith.mulf %60, %64 : vector<8x128xf32>
    %66 = vector.broadcast %46 : vector<1x128xf32> to vector<8x128xf32>
    %67 = arith.mulf %65, %66 : vector<8x128xf32>
    %68 = vector.broadcast %47 : vector<1x128xf32> to vector<8x128xf32>
    %69 = arith.addf %67, %68 : vector<8x128xf32>
    %cst_37 = arith.constant 0.000000e+00 : f32
    %70 = vector.broadcast %cst_37 : f32 to vector<8x128xf32>
    %71 = arith.maximumf %69, %70 : vector<8x128xf32>
    %c0_38 = arith.constant 0 : index
    %c0_39 = arith.constant 0 : index
    %72 = vector.load %arg13[%c0_38, %c0_39] : memref<128x128xf32, #tpu.memory_space<vmem>>, vector<128x128xf32>
    %cst_40 = arith.constant dense<0.000000e+00> : vector<8x128xf32>
    %73 = tpu.matmul %71, %72, %cst_40 {dimension_numbers = #tpu.dot_dimension_numbers<[1], [0], [0], [1], [0, 0, 1, 1], [], []>} : vector<8x128xf32>, vector<128x128xf32>, vector<8x128xf32> -> vector<8x128xf32>
    %c0_41 = arith.constant 0 : index
    %c0_42 = arith.constant 0 : index
    %74 = vector.load %arg14[%c0_41, %c0_42] : memref<1x128xf32, #tpu.memory_space<vmem>>, vector<1x128xf32>
    %75 = vector.broadcast %74 : vector<1x128xf32> to vector<8x128xf32>
    %76 = arith.addf %73, %75 : vector<8x128xf32>
    %c0_43 = arith.constant 0 : index
    %c0_44 = arith.constant 0 : index
    %77 = vector.load %arg26[%c0_43, %c0_44] : memref<1x128xf32, #tpu.memory_space<vmem>>, vector<1x128xf32>
    %cst_45 = arith.constant dense<0.000000e+00> : vector<128xf32>
    %78 = vector.multi_reduction <add>, %76, %cst_45 [0] : vector<8x128xf32> to vector<128xf32>
    %79 = vector.shape_cast %78 : vector<128xf32> to vector<1x128xf32>
    %80 = arith.addf %77, %79 : vector<1x128xf32>
    %c0_46 = arith.constant 0 : index
    %c0_47 = arith.constant 0 : index
    %81 = vector.load %arg26[%c0_46, %c0_47] : memref<1x128xf32, #tpu.memory_space<vmem>>, vector<1x128xf32>
    tpu.vector_store %arg26[%c0_46, %c0_47], %80 {strides = array<i32>} : memref<1x128xf32, #tpu.memory_space<vmem>>, vector<1x128xf32>,
    %c0_i32_48 = arith.constant 0 : i32
    %82 = arith.cmpi eq, %arg1, %c0_i32_48 : i32
    %83 = arith.extui %82 : i1 to i32
    %c0_i32_49 = arith.constant 0 : i32
    %84 = arith.cmpi ne, %83, %c0_i32_49 : i32
    scf.if %84 {
      %c0_50 = arith.constant 0 : index
      %c0_51 = arith.constant 0 : index
      %85 = vector.load %arg26[%c0_50, %c0_51] : memref<1x128xf32, #tpu.memory_space<vmem>>, vector<1x128xf32>
      %cst_52 = arith.constant 1.250000e-01 : f32
      %86 = vector.broadcast %cst_52 : f32 to vector<1x128xf32>
      %87 = arith.mulf %85, %86 : vector<1x128xf32>
      %c0_53 = arith.constant 0 : index
      %c0_54 = arith.constant 0 : index
      %88 = vector.load %arg15[%c0_53, %c0_54] : memref<128x128xf32, #tpu.memory_space<vmem>>, vector<128x128xf32>
      %cst_55 = arith.constant dense<0.000000e+00> : vector<1x128xf32>
      %89 = tpu.matmul %87, %88, %cst_55 {dimension_numbers = #tpu.dot_dimension_numbers<[1], [0], [0], [1], [0, 0, 1, 1], [], []>} : vector<1x128xf32>, vector<128x128xf32>, vector<1x128xf32> -> vector<1x128xf32>
      %c0_56 = arith.constant 0 : index
      %c0_57 = arith.constant 0 : index
      %90 = vector.load %arg16[%c0_56, %c0_57] : memref<1x128xf32, #tpu.memory_space<vmem>>, vector<1x128xf32>
      %91 = arith.addf %89, %90 : vector<1x128xf32>
      %c0_58 = arith.constant 0 : index
      %c0_59 = arith.constant 0 : index
      %92 = vector.load %arg17[%c0_58, %c0_59] : memref<1x128xf32, #tpu.memory_space<vmem>>, vector<1x128xf32>
      %c0_60 = arith.constant 0 : index
      %c0_61 = arith.constant 0 : index
      %93 = vector.load %arg18[%c0_60, %c0_61] : memref<1x128xf32, #tpu.memory_space<vmem>>, vector<1x128xf32>
      %cst_62 = arith.constant dense<0.000000e+00> : vector<1xf32>
      %94 = vector.multi_reduction <add>, %91, %cst_62 [1] : vector<1x128xf32> to vector<1xf32>
      %95 = vector.shape_cast %94 : vector<1xf32> to vector<1x1xf32>
      %cst_63 = arith.constant 0.00999999977 : f32
      %96 = vector.broadcast %cst_63 : f32 to vector<1x1xf32>
      %97 = arith.mulf %95, %96 : vector<1x1xf32>
      %98 = arith.mulf %91, %91 : vector<1x128xf32>
      %cst_64 = arith.constant dense<0.000000e+00> : vector<1xf32>
      %99 = vector.multi_reduction <add>, %98, %cst_64 [1] : vector<1x128xf32> to vector<1xf32>
      %100 = vector.shape_cast %99 : vector<1xf32> to vector<1x1xf32>
      %cst_65 = arith.constant 0.00999999977 : f32
      %101 = vector.broadcast %cst_65 : f32 to vector<1x1xf32>
      %102 = arith.mulf %100, %101 : vector<1x1xf32>
      %103 = arith.mulf %97, %97 : vector<1x1xf32>
      %104 = arith.subf %102, %103 : vector<1x1xf32>
      %105 = vector.broadcast %97 : vector<1x1xf32> to vector<1x128xf32>
      %106 = arith.subf %91, %105 : vector<1x128xf32>
      %cst_66 = arith.constant 9.99999974E-6 : f32
      %107 = vector.broadcast %cst_66 : f32 to vector<1x1xf32>
      %108 = arith.addf %104, %107 : vector<1x1xf32>
      %109 = math.rsqrt %108 : vector<1x1xf32>
      %110 = vector.broadcast %109 : vector<1x1xf32> to vector<1x128xf32>
      %111 = arith.mulf %106, %110 : vector<1x128xf32>
      %112 = arith.mulf %111, %92 : vector<1x128xf32>
      %113 = arith.addf %112, %93 : vector<1x128xf32>
      %cst_67 = arith.constant 0.000000e+00 : f32
      %114 = vector.broadcast %cst_67 : f32 to vector<1x128xf32>
      %115 = arith.maximumf %113, %114 : vector<1x128xf32>
      %c0_68 = arith.constant 0 : index
      %c0_69 = arith.constant 0 : index
      %116 = vector.load %arg19[%c0_68, %c0_69] : memref<128x128xf32, #tpu.memory_space<vmem>>, vector<128x128xf32>
      %cst_70 = arith.constant dense<0.000000e+00> : vector<1x128xf32>
      %117 = tpu.matmul %115, %116, %cst_70 {dimension_numbers = #tpu.dot_dimension_numbers<[1], [0], [0], [1], [0, 0, 1, 1], [], []>} : vector<1x128xf32>, vector<128x128xf32>, vector<1x128xf32> -> vector<1x128xf32>
      %c0_71 = arith.constant 0 : index
      %c0_72 = arith.constant 0 : index
      %118 = vector.load %arg20[%c0_71, %c0_72] : memref<1x128xf32, #tpu.memory_space<vmem>>, vector<1x128xf32>
      %119 = arith.addf %117, %118 : vector<1x128xf32>
      %c0_73 = arith.constant 0 : index
      %c0_74 = arith.constant 0 : index
      %120 = vector.load %arg21[%c0_73, %c0_74] : memref<1x128xf32, #tpu.memory_space<vmem>>, vector<1x128xf32>
      %c0_75 = arith.constant 0 : index
      %c0_76 = arith.constant 0 : index
      %121 = vector.load %arg22[%c0_75, %c0_76] : memref<1x128xf32, #tpu.memory_space<vmem>>, vector<1x128xf32>
      %cst_77 = arith.constant dense<0.000000e+00> : vector<1xf32>
      %122 = vector.multi_reduction <add>, %119, %cst_77 [1] : vector<1x128xf32> to vector<1xf32>
      %123 = vector.shape_cast %122 : vector<1xf32> to vector<1x1xf32>
      %cst_78 = arith.constant 0.00999999977 : f32
      %124 = vector.broadcast %cst_78 : f32 to vector<1x1xf32>
      %125 = arith.mulf %123, %124 : vector<1x1xf32>
      %126 = arith.mulf %119, %119 : vector<1x128xf32>
      %cst_79 = arith.constant dense<0.000000e+00> : vector<1xf32>
      %127 = vector.multi_reduction <add>, %126, %cst_79 [1] : vector<1x128xf32> to vector<1xf32>
      %128 = vector.shape_cast %127 : vector<1xf32> to vector<1x1xf32>
      %cst_80 = arith.constant 0.00999999977 : f32
      %129 = vector.broadcast %cst_80 : f32 to vector<1x1xf32>
      %130 = arith.mulf %128, %129 : vector<1x1xf32>
      %131 = arith.mulf %125, %125 : vector<1x1xf32>
      %132 = arith.subf %130, %131 : vector<1x1xf32>
      %133 = vector.broadcast %125 : vector<1x1xf32> to vector<1x128xf32>
      %134 = arith.subf %119, %133 : vector<1x128xf32>
      %cst_81 = arith.constant 9.99999974E-6 : f32
      %135 = vector.broadcast %cst_81 : f32 to vector<1x1xf32>
      %136 = arith.addf %132, %135 : vector<1x1xf32>
      %137 = math.rsqrt %136 : vector<1x1xf32>
      %138 = vector.broadcast %137 : vector<1x1xf32> to vector<1x128xf32>
      %139 = arith.mulf %134, %138 : vector<1x128xf32>
      %140 = arith.mulf %139, %120 : vector<1x128xf32>
      %141 = arith.addf %140, %121 : vector<1x128xf32>
      %cst_82 = arith.constant 0.000000e+00 : f32
      %142 = vector.broadcast %cst_82 : f32 to vector<1x128xf32>
      %143 = arith.maximumf %141, %142 : vector<1x128xf32>
      %c0_83 = arith.constant 0 : index
      %c0_84 = arith.constant 0 : index
      %144 = vector.load %arg23[%c0_83, %c0_84] : memref<128x128xf32, #tpu.memory_space<vmem>>, vector<128x128xf32>
      %cst_85 = arith.constant dense<0.000000e+00> : vector<1x128xf32>
      %145 = tpu.matmul %143, %144, %cst_85 {dimension_numbers = #tpu.dot_dimension_numbers<[1], [0], [0], [1], [0, 0, 1, 1], [], []>} : vector<1x128xf32>, vector<128x128xf32>, vector<1x128xf32> -> vector<1x128xf32>
      %c0_86 = arith.constant 0 : index
      %c0_87 = arith.constant 0 : index
      %146 = vector.load %arg24[%c0_86, %c0_87] : memref<1x128xf32, #tpu.memory_space<vmem>>, vector<1x128xf32>
      %147 = arith.addf %145, %146 : vector<1x128xf32>
      %c0_88 = arith.constant 0 : index
      %c0_89 = arith.constant 0 : index
      %c0_90 = arith.constant 0 : index
      %148 = vector.load %arg25[%c0_88, %c0_89, %c0_90] : memref<1x1x128xf32, #tpu.memory_space<vmem>>, vector<1x1x128xf32>
      %149 = vector.shape_cast %148 : vector<1x1x128xf32> to vector<1x128xf32>
      %150 = vector.shape_cast %147 : vector<1x128xf32> to vector<1x1x128xf32>
      tpu.vector_store %arg25[%c0_88, %c0_89, %c0_90], %150 {strides = array<i32>} : memref<1x1x128xf32, #tpu.memory_space<vmem>>, vector<1x1x128xf32>,
    } else {
    }
    return
  }
  func.func @transform_0(%arg0: i32, %arg1: i32) -> (i32, i32, i32) {
    %c0_i32 = arith.constant 0 : i32
    %c0_i32_0 = arith.constant 0 : i32
    return %arg0, %arg1, %c0_i32 : i32, i32, i32
  }
  func.func @transform_1(%arg0: i32, %arg1: i32) -> (i32, i32, i32) {
    %c0_i32 = arith.constant 0 : i32
    %c0_i32_0 = arith.constant 0 : i32
    return %arg0, %arg1, %c0_i32 : i32, i32, i32
  }
  func.func @transform_2(%arg0: i32, %arg1: i32) -> (i32, i32) {
    %c0_i32 = arith.constant 0 : i32
    %c0_i32_0 = arith.constant 0 : i32
    %c0_i32_1 = arith.constant 0 : i32
    return %c0_i32, %c0_i32_0 : i32, i32
  }
  func.func @transform_3(%arg0: i32, %arg1: i32) -> (i32, i32) {
    %c0_i32 = arith.constant 0 : i32
    %c0_i32_0 = arith.constant 0 : i32
    %c0_i32_1 = arith.constant 0 : i32
    return %c0_i32, %c0_i32_0 : i32, i32
  }
  func.func @transform_4(%arg0: i32, %arg1: i32) -> (i32, i32) {
    %c0_i32 = arith.constant 0 : i32
    %c0_i32_0 = arith.constant 0 : i32
    %c0_i32_1 = arith.constant 0 : i32
    return %c0_i32, %c0_i32_0 : i32, i32
  }
  func.func @transform_5(%arg0: i32, %arg1: i32) -> (i32, i32) {
    %c0_i32 = arith.constant 0 : i32
    %c0_i32_0 = arith.constant 0 : i32
    %c0_i32_1 = arith.constant 0 : i32
    return %c0_i32, %c0_i32_0 : i32, i32
  }
  func.func @transform_6(%arg0: i32, %arg1: i32) -> (i32, i32) {
    %c0_i32 = arith.constant 0 : i32
    %c0_i32_0 = arith.constant 0 : i32
    %c0_i32_1 = arith.constant 0 : i32
    return %c0_i32, %c0_i32_0 : i32, i32
  }
  func.func @transform_7(%arg0: i32, %arg1: i32) -> (i32, i32) {
    %c0_i32 = arith.constant 0 : i32
    %c0_i32_0 = arith.constant 0 : i32
    %c0_i32_1 = arith.constant 0 : i32
    return %c0_i32, %c0_i32_0 : i32, i32
  }
  func.func @transform_8(%arg0: i32, %arg1: i32) -> (i32, i32) {
    %c0_i32 = arith.constant 0 : i32
    %c0_i32_0 = arith.constant 0 : i32
    %c0_i32_1 = arith.constant 0 : i32
    return %c0_i32, %c0_i32_0 : i32, i32
  }
  func.func @transform_9(%arg0: i32, %arg1: i32) -> (i32, i32) {
    %c0_i32 = arith.constant 0 : i32
    %c0_i32_0 = arith.constant 0 : i32
    %c0_i32_1 = arith.constant 0 : i32
    return %c0_i32, %c0_i32_0 : i32, i32
  }
  func.func @transform_10(%arg0: i32, %arg1: i32) -> (i32, i32) {
    %c0_i32 = arith.constant 0 : i32
    %c0_i32_0 = arith.constant 0 : i32
    %c0_i32_1 = arith.constant 0 : i32
    return %c0_i32, %c0_i32_0 : i32, i32
  }
  func.func @transform_11(%arg0: i32, %arg1: i32) -> (i32, i32) {
    %c0_i32 = arith.constant 0 : i32
    %c0_i32_0 = arith.constant 0 : i32
    %c0_i32_1 = arith.constant 0 : i32
    return %c0_i32, %c0_i32_0 : i32, i32
  }
  func.func @transform_12(%arg0: i32, %arg1: i32) -> (i32, i32) {
    %c0_i32 = arith.constant 0 : i32
    %c0_i32_0 = arith.constant 0 : i32
    %c0_i32_1 = arith.constant 0 : i32
    return %c0_i32, %c0_i32_0 : i32, i32
  }
  func.func @transform_13(%arg0: i32, %arg1: i32) -> (i32, i32) {
    %c0_i32 = arith.constant 0 : i32
    %c0_i32_0 = arith.constant 0 : i32
    %c0_i32_1 = arith.constant 0 : i32
    return %c0_i32, %c0_i32_0 : i32, i32
  }
  func.func @transform_14(%arg0: i32, %arg1: i32) -> (i32, i32) {
    %c0_i32 = arith.constant 0 : i32
    %c0_i32_0 = arith.constant 0 : i32
    %c0_i32_1 = arith.constant 0 : i32
    return %c0_i32, %c0_i32_0 : i32, i32
  }
  func.func @transform_15(%arg0: i32, %arg1: i32) -> (i32, i32) {
    %c0_i32 = arith.constant 0 : i32
    %c0_i32_0 = arith.constant 0 : i32
    %c0_i32_1 = arith.constant 0 : i32
    return %c0_i32, %c0_i32_0 : i32, i32
  }
  func.func @transform_16(%arg0: i32, %arg1: i32) -> (i32, i32) {
    %c0_i32 = arith.constant 0 : i32
    %c0_i32_0 = arith.constant 0 : i32
    %c0_i32_1 = arith.constant 0 : i32
    return %c0_i32, %c0_i32_0 : i32, i32
  }
  func.func @transform_17(%arg0: i32, %arg1: i32) -> (i32, i32) {
    %c0_i32 = arith.constant 0 : i32
    %c0_i32_0 = arith.constant 0 : i32
    %c0_i32_1 = arith.constant 0 : i32
    return %c0_i32, %c0_i32_0 : i32, i32
  }
  func.func @transform_18(%arg0: i32, %arg1: i32) -> (i32, i32) {
    %c0_i32 = arith.constant 0 : i32
    %c0_i32_0 = arith.constant 0 : i32
    %c0_i32_1 = arith.constant 0 : i32
    return %c0_i32, %c0_i32_0 : i32, i32
  }
  func.func @transform_19(%arg0: i32, %arg1: i32) -> (i32, i32) {
    %c0_i32 = arith.constant 0 : i32
    %c0_i32_0 = arith.constant 0 : i32
    %c0_i32_1 = arith.constant 0 : i32
    return %c0_i32, %c0_i32_0 : i32, i32
  }
  func.func @transform_20(%arg0: i32, %arg1: i32) -> (i32, i32) {
    %c0_i32 = arith.constant 0 : i32
    %c0_i32_0 = arith.constant 0 : i32
    %c0_i32_1 = arith.constant 0 : i32
    return %c0_i32, %c0_i32_0 : i32, i32
  }
  func.func @transform_21(%arg0: i32, %arg1: i32) -> (i32, i32) {
    %c0_i32 = arith.constant 0 : i32
    %c0_i32_0 = arith.constant 0 : i32
    %c0_i32_1 = arith.constant 0 : i32
    return %c0_i32, %c0_i32_0 : i32, i32
  }
  func.func @transform_22(%arg0: i32, %arg1: i32) -> (i32, i32) {
    %c0_i32 = arith.constant 0 : i32
    %c0_i32_0 = arith.constant 0 : i32
    %c0_i32_1 = arith.constant 0 : i32
    return %c0_i32, %c0_i32_0 : i32, i32
  }
  func.func @transform_23(%arg0: i32, %arg1: i32) -> (i32, i32, i32) {
    %c0_i32 = arith.constant 0 : i32
    %c0_i32_0 = arith.constant 0 : i32
    %c0_i32_1 = arith.constant 0 : i32
    return %arg0, %c0_i32, %c0_i32_0 : i32, i32, i32
  }
}

</mosaic_0001>

<llo_original>
// kernel: tpu_custom_call.1
$region0: #{tpu_custom_call.1}
  #allocation0 [shape = 'u32[]', space=smem, size = 0x4, offset = 0x4, fixed_abs, tag = 'smem constant byte address 0x4 - core index']
  #allocation1 [shape = 'u32[72,128]{1,0:T(1,128)}', space=vmem, size = 0x9000, scoped, tag = 'internal scratch']
  #allocation2 [shape = 'f32[1,128]{1,0:T(1,128)}', space=vmem, size = 0x200, scoped, tag = 'scratch operand']
  %s0 = inlined_call_operand.vmem [shape: f32[2,8,3], index: 0, kind: input, shape index: {}]
  %s1 = inlined_call_operand.vmem [shape: f32[2,8,3], index: 1, kind: input, shape index: {}]
  %s2 = inlined_call_operand.vmem [shape: f32[3,128], index: 2, kind: input, shape index: {}]
  %s3 = inlined_call_operand.vmem [shape: f32[3,128], index: 3, kind: input, shape index: {}]
  %s4 = inlined_call_operand.vmem [shape: f32[1,128], index: 4, kind: input, shape index: {}]
  %s5 = inlined_call_operand.vmem [shape: f32[1,128], index: 5, kind: input, shape index: {}]
  %s6 = inlined_call_operand.vmem [shape: f32[1,128], index: 6, kind: input, shape index: {}]
  %s7 = inlined_call_operand.hbm [shape: f32[128,128], index: 7, kind: input, shape index: {}]
  %s8 = inlined_call_operand.vmem [shape: f32[1,128], index: 8, kind: input, shape index: {}]
  %s9 = inlined_call_operand.vmem [shape: f32[1,128], index: 9, kind: input, shape index: {}]
  %s10 = inlined_call_operand.vmem [shape: f32[1,128], index: 10, kind: input, shape index: {}]
  %s11 = inlined_call_operand.hbm [shape: f32[128,128], index: 11, kind: input, shape index: {}]
  %s12 = inlined_call_operand.vmem [shape: f32[1,128], index: 12, kind: input, shape index: {}]
  %s13 = inlined_call_operand.hbm [shape: f32[128,128], index: 13, kind: input, shape index: {}]
  %s14 = inlined_call_operand.vmem [shape: f32[1,128], index: 14, kind: input, shape index: {}]
  %s15 = inlined_call_operand.vmem [shape: f32[1,128], index: 15, kind: input, shape index: {}]
  %s16 = inlined_call_operand.vmem [shape: f32[1,128], index: 16, kind: input, shape index: {}]
  %s17 = inlined_call_operand.hbm [shape: f32[128,128], index: 17, kind: input, shape index: {}]
  %s18 = inlined_call_operand.vmem [shape: f32[1,128], index: 18, kind: input, shape index: {}]
  %s19 = inlined_call_operand.vmem [shape: f32[1,128], index: 19, kind: input, shape index: {}]
  %s20 = inlined_call_operand.vmem [shape: f32[1,128], index: 20, kind: input, shape index: {}]
  %s21 = inlined_call_operand.hbm [shape: f32[128,128], index: 21, kind: input, shape index: {}]
  %s22 = inlined_call_operand.vmem [shape: f32[1,128], index: 22, kind: input, shape index: {}]
  %s23 = inlined_call_operand.hbm [shape: f32[2,1,128], index: 23, kind: output, shape index: {}]
  %s24 = sld [smem:[#allocation0]]
  $region153: #{tpu_custom_call.1} parent=0
    _
  %s26 = ssub.s32 1, %s24
  %s27 = scalar_select 0, %s26, %s24
  $region1: #{tpu_custom_call.1} parent=0
    #allocation3 [shape = 'u8[65536]{0}', space=vmem, size = 0x10000, scoped, tag = 'input window, operand 7, single buffered']
    #allocation4 [shape = 's32[2]{0}', space=sflag, size = 0x8, scoped, tag = 'scoped memory for tpu_custom_call.1']
    #allocation5 [shape = 's32[2]{0}', space=sflag, size = 0x8, scoped, tag = 'scoped memory for tpu_custom_call.1']
    #allocation6 [shape = 'u8[65536]{0}', space=vmem, size = 0x10000, scoped, tag = 'input window, operand 11, single buffered']
    #allocation7 [shape = 's32[1]{0}', space=sflag, size = 0x4, scoped, tag = 'scoped memory for tpu_custom_call.1']
    #allocation8 [shape = 'u8[65536]{0}', space=vmem, size = 0x10000, scoped, tag = 'input window, operand 13, single buffered']
    #allocation9 [shape = 'u8[65536]{0}', space=vmem, size = 0x10000, scoped, tag = 'input window, operand 17, single buffered']
    #allocation10 [shape = 's32[1]{0}', space=sflag, size = 0x4, scoped, tag = 'scoped memory for tpu_custom_call.1']
    #allocation11 [shape = 'u8[65536]{0}', space=vmem, size = 0x10000, scoped, tag = 'input window, operand 21, single buffered']
    #allocation12 [shape = 'u8[1024]{0}', space=vmem, size = 0x400, scoped, tag = 'output window, operand 0']
    %28 = vsyncpa [#allocation4], 0
    %29 = vsyncpa [#allocation7], 0
    %30 = vsyncpa [#allocation10], 0
    %31 = vsyncpa [#allocation5], 0
    %s32 = scalar_lea.sflag [#allocation5], 1
    %33 = vsyncpa %s32, 0
    loop: start=0, step=1, limit=4
    $region2: #{tpu_custom_call.1} parent=1 // loop_pre_header
      _
    $region3: #{tpu_custom_call.1} parent=1 // loop_header
      %s35 = sphi 0, %s39
      %p36 = scmp.ge.s32.totalorder %s35, 4
      %s42 = sphi 0, %s54
      %s43 = sphi 0, %s50
      %s44 = sphi 0, %s42
      %s45 = sphi 0, %s43
      %s46 = sphi 0, %s44
      %s47 = sphi 0, %s45
      %s59 = sphi 0, %s61
      %s62 = sphi 0, %s59
      %s63 = sphi 0, %s62
      %s79 = sphi 0, %s63
      %s87 = sphi 0, %s89
      %s90 = sphi 0, %s87
      %s91 = sphi 0, %s90
      %s107 = sphi 0, %s91
      %s111 = sphi 0, %s111
      %s113 = sphi 0, %s111
      %s114 = sphi 0, %s113
      %s128 = sphi 0, %s114
      %s132 = sphi 0, %s132
      %s134 = sphi 0, %s132
      %s135 = sphi 0, %s134
      %s149 = sphi 0, %s135
      %s153 = sphi 0, %s153
      %s155 = sphi 0, %s153
      %s156 = sphi 0, %s155
      %s170 = sphi 0, %s156
      %s174 = sphi 0, %s174
      %s176 = sphi 0, %s174
      %s177 = sphi 0, %s176
      %s191 = sphi 0, %s177
      %s195 = sphi 0, %s195
      %s197 = sphi 0, %s195
      %s198 = sphi 0, %s197
      %s212 = sphi 0, %s198
      %s216 = sphi 0, %s216
      %s218 = sphi 0, %s216
      %s219 = sphi 0, %s218
      %s233 = sphi 0, %s219
      %s237 = sphi 0, %s237
      %s239 = sphi 0, %s237
      %s240 = sphi 0, %s239
      %s254 = sphi 0, %s240
      %s258 = sphi 0, %s258
      %s260 = sphi 0, %s258
      %s261 = sphi 0, %s260
      %s275 = sphi 0, %s261
      %s279 = sphi 0, %s279
      %s281 = sphi 0, %s279
      %s282 = sphi 0, %s281
      %s296 = sphi 0, %s282
      %s300 = sphi 0, %s300
      %s302 = sphi 0, %s300
      %s303 = sphi 0, %s302
      %s317 = sphi 0, %s303
      %s321 = sphi 0, %s321
      %s323 = sphi 0, %s321
      %s324 = sphi 0, %s323
      %s338 = sphi 0, %s324
      %s342 = sphi 0, %s342
      %s344 = sphi 0, %s342
      %s345 = sphi 0, %s344
      %s359 = sphi 0, %s345
      %s363 = sphi 0, %s363
      %s365 = sphi 0, %s363
      %s366 = sphi 0, %s365
      %s380 = sphi 0, %s366
      %s384 = sphi 0, %s384
      %s386 = sphi 0, %s384
      %s387 = sphi 0, %s386
      %s401 = sphi 0, %s387
      %s405 = sphi 0, %s405
      %s407 = sphi 0, %s405
      %s408 = sphi 0, %s407
      %s422 = sphi 0, %s408
      %s426 = sphi 0, %s426
      %s428 = sphi 0, %s426
      %s429 = sphi 0, %s428
      %s443 = sphi 0, %s429
      %s447 = sphi 0, %s447
      %s449 = sphi 0, %s447
      %s450 = sphi 0, %s449
      %s464 = sphi 0, %s450
      %s468 = sphi 0, %s468
      %s470 = sphi 0, %s468
      %s471 = sphi 0, %s470
      %s485 = sphi 0, %s471
      %s489 = sphi 0, %s489
      %s491 = sphi 0, %s489
      %s492 = sphi 0, %s491
      %s506 = sphi 0, %s492
      %s510 = sphi 0, %s510
      %s512 = sphi 0, %s510
      %s513 = sphi 0, %s512
      %s527 = sphi 0, %s513
      %s531 = sphi 0, %s531
      %s533 = sphi 0, %s531
      %s534 = sphi 0, %s533
      %s548 = sphi 0, %s534
      %s554 = sphi 0, %s556
      %s557 = sphi 0, %s554
      %s558 = sphi 0, %s557
      %s574 = sphi 0, %s558
    $region4: #{tpu_custom_call.1} parent=1 // loop_header_branch
      %38 = sbr.rel (%p36) target = $region8
    $region5: #{tpu_custom_call.1} parent=1 // loop_body
      %s40 = ssub.s32 %s35, 1
      %s41 = ssub.s32 %s35, 2
      %s48 = sadd.s32 1, %s43
      %p49 = scmp.ge.s32.totalorder %s48, 1
      %s50 = scalar_select %p49, 0, %s48
      %s51 = sadd.s32 1, %s42
      %s52 = scalar_select %p49, %s51, %s42
      %p53 = scmp.ge.s32.totalorder %s52, 2
      %s54 = scalar_select %p53, 0, %s52
      %s55 = ssub.s32 %s42, %s54
      %s56 = ssub.s32 %s43, %s50
      %s57 = sor.u32 %s55, %s56
      %p58 = scmp.eq.s32.totalorder %s57, 0
      %s60 = sadd.s32 %s59, 1
      %s61 = scalar_select %p58, %s59, %s60
      %p64 = pneg %p58
      %p65 = scmp.eq.s32.totalorder %s35, 1
      %p66 = por %p64, %p65
      %p67 = scmp.ne.s32.totalorder %s59, %s62
      %p68 = scmp.eq.s32.totalorder %s35, 0
      %p69 = por %p67, %p68
      %p70 = scmp.ne.s32.totalorder %s59, %s62
      %p71 = scmp.eq.s32.totalorder %s40, 1
      %p72 = por %p70, %p71
      %p73 = scmp.ne.s32.totalorder %s62, %s63
      %p74 = scmp.eq.s32.totalorder %s40, 0
      %p75 = por %p73, %p74
      %p76 = scmp.ne.s32.totalorder %s62, %s63
      %p77 = scmp.eq.s32.totalorder %s41, 1
      %p78 = por %p76, %p77
      %p80 = scmp.ne.s32.totalorder %s63, %s79
      %p81 = scmp.eq.s32.totalorder %s41, 0
      %p82 = por %p80, %p81
      %s83 = ssub.s32 %s42, %s54
      %s84 = ssub.s32 %s43, %s50
      %s85 = sor.u32 %s83, %s84
      %p86 = scmp.eq.s32.totalorder %s85, 0
      %s88 = sadd.s32 %s87, 1
      %s89 = scalar_select %p86, %s87, %s88
      %p92 = pneg %p86
      %p93 = scmp.eq.s32.totalorder %s35, 1
      %p94 = por %p92, %p93
      %p95 = scmp.ne.s32.totalorder %s87, %s90
      %p96 = scmp.eq.s32.totalorder %s35, 0
      %p97 = por %p95, %p96
      %p98 = scmp.ne.s32.totalorder %s87, %s90
      %p99 = scmp.eq.s32.totalorder %s40, 1
      %p100 = por %p98, %p99
      %p101 = scmp.ne.s32.totalorder %s90, %s91
      %p102 = scmp.eq.s32.totalorder %s40, 0
      %p103 = por %p101, %p102
      %p104 = scmp.ne.s32.totalorder %s90, %s91
      %p105 = scmp.eq.s32.totalorder %s41, 1
      %p106 = por %p104, %p105
      %p108 = scmp.ne.s32.totalorder %s91, %s107
      %p109 = scmp.eq.s32.totalorder %s41, 0
      %p110 = por %p108, %p109
      %s112 = sadd.s32 %s111, 1
      %p115 = scmp.eq.s32.totalorder %s35, 1
      %p116 = scmp.ne.s32.totalorder %s111, %s113
      %p117 = scmp.eq.s32.totalorder %s35, 0
      %p118 = por %p116, %p117
      %p119 = scmp.ne.s32.totalorder %s111, %s113
      %p120 = scmp.eq.s32.totalorder %s40, 1
      %p121 = por %p119, %p120
      %p122 = scmp.ne.s32.totalorder %s113, %s114
      %p123 = scmp.eq.s32.totalorder %s40, 0
      %p124 = por %p122, %p123
      %p125 = scmp.ne.s32.totalorder %s113, %s114
      %p126 = scmp.eq.s32.totalorder %s41, 1
      %p127 = por %p125, %p126
      %p129 = scmp.ne.s32.totalorder %s114, %s128
      %p130 = scmp.eq.s32.totalorder %s41, 0
      %p131 = por %p129, %p130
      %s133 = sadd.s32 %s132, 1
      %p136 = scmp.eq.s32.totalorder %s35, 1
      %p137 = scmp.ne.s32.totalorder %s132, %s134
      %p138 = scmp.eq.s32.totalorder %s35, 0
      %p139 = por %p137, %p138
      %p140 = scmp.ne.s32.totalorder %s132, %s134
      %p141 = scmp.eq.s32.totalorder %s40, 1
      %p142 = por %p140, %p141
      %p143 = scmp.ne.s32.totalorder %s134, %s135
      %p144 = scmp.eq.s32.totalorder %s40, 0
      %p145 = por %p143, %p144
      %p146 = scmp.ne.s32.totalorder %s134, %s135
      %p147 = scmp.eq.s32.totalorder %s41, 1
      %p148 = por %p146, %p147
      %p150 = scmp.ne.s32.totalorder %s135, %s149
      %p151 = scmp.eq.s32.totalorder %s41, 0
      %p152 = por %p150, %p151
      %s154 = sadd.s32 %s153, 1
      %p157 = scmp.eq.s32.totalorder %s35, 1
      %p158 = scmp.ne.s32.totalorder %s153, %s155
      %p159 = scmp.eq.s32.totalorder %s35, 0
      %p160 = por %p158, %p159
      %p161 = scmp.ne.s32.totalorder %s153, %s155
      %p162 = scmp.eq.s32.totalorder %s40, 1
      %p163 = por %p161, %p162
      %p164 = scmp.ne.s32.totalorder %s155, %s156
      %p165 = scmp.eq.s32.totalorder %s40, 0
      %p166 = por %p164, %p165
      %p167 = scmp.ne.s32.totalorder %s155, %s156
      %p168 = scmp.eq.s32.totalorder %s41, 1
      %p169 = por %p167, %p168
      %p171 = scmp.ne.s32.totalorder %s156, %s170
      %p172 = scmp.eq.s32.totalorder %s41, 0
      %p173 = por %p171, %p172
      %s175 = sadd.s32 %s174, 1
      %p178 = scmp.eq.s32.totalorder %s35, 1
      %p179 = scmp.ne.s32.totalorder %s174, %s176
      %p180 = scmp.eq.s32.totalorder %s35, 0
      %p181 = por %p179, %p180
      %p182 = scmp.ne.s32.totalorder %s174, %s176
      %p183 = scmp.eq.s32.totalorder %s40, 1
      %p184 = por %p182, %p183
      %p185 = scmp.ne.s32.totalorder %s176, %s177
      %p186 = scmp.eq.s32.totalorder %s40, 0
      %p187 = por %p185, %p186
      %p188 = scmp.ne.s32.totalorder %s176, %s177
      %p189 = scmp.eq.s32.totalorder %s41, 1
      %p190 = por %p188, %p189
      %p192 = scmp.ne.s32.totalorder %s177, %s191
      %p193 = scmp.eq.s32.totalorder %s41, 0
      %p194 = por %p192, %p193
      %s196 = sadd.s32 %s195, 1
      %p199 = scmp.eq.s32.totalorder %s35, 1
      %p200 = scmp.ne.s32.totalorder %s195, %s197
      %p201 = scmp.eq.s32.totalorder %s35, 0
      %p202 = por %p200, %p201
      %p203 = scmp.ne.s32.totalorder %s195, %s197
      %p204 = scmp.eq.s32.totalorder %s40, 1
      %p205 = por %p203, %p204
      %p206 = scmp.ne.s32.totalorder %s197, %s198
      %p207 = scmp.eq.s32.totalorder %s40, 0
      %p208 = por %p206, %p207
      %p209 = scmp.ne.s32.totalorder %s197, %s198
      %p210 = scmp.eq.s32.totalorder %s41, 1
      %p211 = por %p209, %p210
      %p213 = scmp.ne.s32.totalorder %s198, %s212
      %p214 = scmp.eq.s32.totalorder %s41, 0
      %p215 = por %p213, %p214
      %s217 = sadd.s32 %s216, 1
      %p220 = scmp.eq.s32.totalorder %s35, 1
      %p221 = scmp.ne.s32.totalorder %s216, %s218
      %p222 = scmp.eq.s32.totalorder %s35, 0
      %p223 = por %p221, %p222
      %p224 = scmp.ne.s32.totalorder %s216, %s218
      %p225 = scmp.eq.s32.totalorder %s40, 1
      %p226 = por %p224, %p225
      %p227 = scmp.ne.s32.totalorder %s218, %s219
      %p228 = scmp.eq.s32.totalorder %s40, 0
      %p229 = por %p227, %p228
      %p230 = scmp.ne.s32.totalorder %s218, %s219
      %p231 = scmp.eq.s32.totalorder %s41, 1
      %p232 = por %p230, %p231
      %p234 = scmp.ne.s32.totalorder %s219, %s233
      %p235 = scmp.eq.s32.totalorder %s41, 0
      %p236 = por %p234, %p235
      %s238 = sadd.s32 %s237, 1
      %p241 = scmp.eq.s32.totalorder %s35, 1
      %p242 = scmp.ne.s32.totalorder %s237, %s239
      %p243 = scmp.eq.s32.totalorder %s35, 0
      %p244 = por %p242, %p243
      %p245 = scmp.ne.s32.totalorder %s237, %s239
      %p246 = scmp.eq.s32.totalorder %s40, 1
      %p247 = por %p245, %p246
      %p248 = scmp.ne.s32.totalorder %s239, %s240
      %p249 = scmp.eq.s32.totalorder %s40, 0
      %p250 = por %p248, %p249
      %p251 = scmp.ne.s32.totalorder %s239, %s240
      %p252 = scmp.eq.s32.totalorder %s41, 1
      %p253 = por %p251, %p252
      %p255 = scmp.ne.s32.totalorder %s240, %s254
      %p256 = scmp.eq.s32.totalorder %s41, 0
      %p257 = por %p255, %p256
      %s259 = sadd.s32 %s258, 1
      %p262 = scmp.eq.s32.totalorder %s35, 1
      %p263 = scmp.ne.s32.totalorder %s258, %s260
      %p264 = scmp.eq.s32.totalorder %s35, 0
      %p265 = por %p263, %p264
      %p266 = scmp.ne.s32.totalorder %s258, %s260
      %p267 = scmp.eq.s32.totalorder %s40, 1
      %p268 = por %p266, %p267
      %p269 = scmp.ne.s32.totalorder %s260, %s261
      %p270 = scmp.eq.s32.totalorder %s40, 0
      %p271 = por %p269, %p270
      %p272 = scmp.ne.s32.totalorder %s260, %s261
      %p273 = scmp.eq.s32.totalorder %s41, 1
      %p274 = por %p272, %p273
      %p276 = scmp.ne.s32.totalorder %s261, %s275
      %p277 = scmp.eq.s32.totalorder %s41, 0
      %p278 = por %p276, %p277
      %s280 = sadd.s32 %s279, 1
      %p283 = scmp.eq.s32.totalorder %s35, 1
      %p284 = scmp.ne.s32.totalorder %s279, %s281
      %p285 = scmp.eq.s32.totalorder %s35, 0
      %p286 = por %p284, %p285
      %p287 = scmp.ne.s32.totalorder %s279, %s281
      %p288 = scmp.eq.s32.totalorder %s40, 1
      %p289 = por %p287, %p288
      %p290 = scmp.ne.s32.totalorder %s281, %s282
      %p291 = scmp.eq.s32.totalorder %s40, 0
      %p292 = por %p290, %p291
      %p293 = scmp.ne.s32.totalorder %s281, %s282
      %p294 = scmp.eq.s32.totalorder %s41, 1
      %p295 = por %p293, %p294
      %p297 = scmp.ne.s32.totalorder %s282, %s296
      %p298 = scmp.eq.s32.totalorder %s41, 0
      %p299 = por %p297, %p298
      %s301 = sadd.s32 %s300, 1
      %p304 = scmp.eq.s32.totalorder %s35, 1
      %p305 = scmp.ne.s32.totalorder %s300, %s302
      %p306 = scmp.eq.s32.totalorder %s35, 0
      %p307 = por %p305, %p306
      %p308 = scmp.ne.s32.totalorder %s300, %s302
      %p309 = scmp.eq.s32.totalorder %s40, 1
      %p310 = por %p308, %p309
      %p311 = scmp.ne.s32.totalorder %s302, %s303
      %p312 = scmp.eq.s32.totalorder %s40, 0
      %p313 = por %p311, %p312
      %p314 = scmp.ne.s32.totalorder %s302, %s303
      %p315 = scmp.eq.s32.totalorder %s41, 1
      %p316 = por %p314, %p315
      %p318 = scmp.ne.s32.totalorder %s303, %s317
      %p319 = scmp.eq.s32.totalorder %s41, 0
      %p320 = por %p318, %p319
      %s322 = sadd.s32 %s321, 1
      %p325 = scmp.eq.s32.totalorder %s35, 1
      %p326 = scmp.ne.s32.totalorder %s321, %s323
      %p327 = scmp.eq.s32.totalorder %s35, 0
      %p328 = por %p326, %p327
      %p329 = scmp.ne.s32.totalorder %s321, %s323
      %p330 = scmp.eq.s32.totalorder %s40, 1
      %p331 = por %p329, %p330
      %p332 = scmp.ne.s32.totalorder %s323, %s324
      %p333 = scmp.eq.s32.totalorder %s40, 0
      %p334 = por %p332, %p333
      %p335 = scmp.ne.s32.totalorder %s323, %s324
      %p336 = scmp.eq.s32.totalorder %s41, 1
      %p337 = por %p335, %p336
      %p339 = scmp.ne.s32.totalorder %s324, %s338
      %p340 = scmp.eq.s32.totalorder %s41, 0
      %p341 = por %p339, %p340
      %s343 = sadd.s32 %s342, 1
      %p346 = scmp.eq.s32.totalorder %s35, 1
      %p347 = scmp.ne.s32.totalorder %s342, %s344
      %p348 = scmp.eq.s32.totalorder %s35, 0
      %p349 = por %p347, %p348
      %p350 = scmp.ne.s32.totalorder %s342, %s344
      %p351 = scmp.eq.s32.totalorder %s40, 1
      %p352 = por %p350, %p351
      %p353 = scmp.ne.s32.totalorder %s344, %s345
      %p354 = scmp.eq.s32.totalorder %s40, 0
      %p355 = por %p353, %p354
      %p356 = scmp.ne.s32.totalorder %s344, %s345
      %p357 = scmp.eq.s32.totalorder %s41, 1
      %p358 = por %p356, %p357
      %p360 = scmp.ne.s32.totalorder %s345, %s359
      %p361 = scmp.eq.s32.totalorder %s41, 0
      %p362 = por %p360, %p361
      %s364 = sadd.s32 %s363, 1
      %p367 = scmp.eq.s32.totalorder %s35, 1
      %p368 = scmp.ne.s32.totalorder %s363, %s365
      %p369 = scmp.eq.s32.totalorder %s35, 0
      %p370 = por %p368, %p369
      %p371 = scmp.ne.s32.totalorder %s363, %s365
      %p372 = scmp.eq.s32.totalorder %s40, 1
      %p373 = por %p371, %p372
      %p374 = scmp.ne.s32.totalorder %s365, %s366
      %p375 = scmp.eq.s32.totalorder %s40, 0
      %p376 = por %p374, %p375
      %p377 = scmp.ne.s32.totalorder %s365, %s366
      %p378 = scmp.eq.s32.totalorder %s41, 1
      %p379 = por %p377, %p378
      %p381 = scmp.ne.s32.totalorder %s366, %s380
      %p382 = scmp.eq.s32.totalorder %s41, 0
      %p383 = por %p381, %p382
      %s385 = sadd.s32 %s384, 1
      %p388 = scmp.eq.s32.totalorder %s35, 1
      %p389 = scmp.ne.s32.totalorder %s384, %s386
      %p390 = scmp.eq.s32.totalorder %s35, 0
      %p391 = por %p389, %p390
      %p392 = scmp.ne.s32.totalorder %s384, %s386
      %p393 = scmp.eq.s32.totalorder %s40, 1
      %p394 = por %p392, %p393
      %p395 = scmp.ne.s32.totalorder %s386, %s387
      %p396 = scmp.eq.s32.totalorder %s40, 0
      %p397 = por %p395, %p396
      %p398 = scmp.ne.s32.totalorder %s386, %s387
      %p399 = scmp.eq.s32.totalorder %s41, 1
      %p400 = por %p398, %p399
      %p402 = scmp.ne.s32.totalorder %s387, %s401
      %p403 = scmp.eq.s32.totalorder %s41, 0
      %p404 = por %p402, %p403
      %s406 = sadd.s32 %s405, 1
      %p409 = scmp.eq.s32.totalorder %s35, 1
      %p410 = scmp.ne.s32.totalorder %s405, %s407
      %p411 = scmp.eq.s32.totalorder %s35, 0
      %p412 = por %p410, %p411
      %p413 = scmp.ne.s32.totalorder %s405, %s407
      %p414 = scmp.eq.s32.totalorder %s40, 1
      %p415 = por %p413, %p414
      %p416 = scmp.ne.s32.totalorder %s407, %s408
      %p417 = scmp.eq.s32.totalorder %s40, 0
      %p418 = por %p416, %p417
      %p419 = scmp.ne.s32.totalorder %s407, %s408
      %p420 = scmp.eq.s32.totalorder %s41, 1
      %p421 = por %p419, %p420
      %p423 = scmp.ne.s32.totalorder %s408, %s422
      %p424 = scmp.eq.s32.totalorder %s41, 0
      %p425 = por %p423, %p424
      %s427 = sadd.s32 %s426, 1
      %p430 = scmp.eq.s32.totalorder %s35, 1
      %p431 = scmp.ne.s32.totalorder %s426, %s428
      %p432 = scmp.eq.s32.totalorder %s35, 0
      %p433 = por %p431, %p432
      %p434 = scmp.ne.s32.totalorder %s426, %s428
      %p435 = scmp.eq.s32.totalorder %s40, 1
      %p436 = por %p434, %p435
      %p437 = scmp.ne.s32.totalorder %s428, %s429
      %p438 = scmp.eq.s32.totalorder %s40, 0
      %p439 = por %p437, %p438
      %p440 = scmp.ne.s32.totalorder %s428, %s429
      %p441 = scmp.eq.s32.totalorder %s41, 1
      %p442 = por %p440, %p441
      %p444 = scmp.ne.s32.totalorder %s429, %s443
      %p445 = scmp.eq.s32.totalorder %s41, 0
      %p446 = por %p444, %p445
      %s448 = sadd.s32 %s447, 1
      %p451 = scmp.eq.s32.totalorder %s35, 1
      %p452 = scmp.ne.s32.totalorder %s447, %s449
      %p453 = scmp.eq.s32.totalorder %s35, 0
      %p454 = por %p452, %p453
      %p455 = scmp.ne.s32.totalorder %s447, %s449
      %p456 = scmp.eq.s32.totalorder %s40, 1
      %p457 = por %p455, %p456
      %p458 = scmp.ne.s32.totalorder %s449, %s450
      %p459 = scmp.eq.s32.totalorder %s40, 0
      %p460 = por %p458, %p459
      %p461 = scmp.ne.s32.totalorder %s449, %s450
      %p462 = scmp.eq.s32.totalorder %s41, 1
      %p463 = por %p461, %p462
      %p465 = scmp.ne.s32.totalorder %s450, %s464
      %p466 = scmp.eq.s32.totalorder %s41, 0
      %p467 = por %p465, %p466
      %s469 = sadd.s32 %s468, 1
      %p472 = scmp.eq.s32.totalorder %s35, 1
      %p473 = scmp.ne.s32.totalorder %s468, %s470
      %p474 = scmp.eq.s32.totalorder %s35, 0
      %p475 = por %p473, %p474
      %p476 = scmp.ne.s32.totalorder %s468, %s470
      %p477 = scmp.eq.s32.totalorder %s40, 1
      %p478 = por %p476, %p477
      %p479 = scmp.ne.s32.totalorder %s470, %s471
      %p480 = scmp.eq.s32.totalorder %s40, 0
      %p481 = por %p479, %p480
      %p482 = scmp.ne.s32.totalorder %s470, %s471
      %p483 = scmp.eq.s32.totalorder %s41, 1
      %p484 = por %p482, %p483
      %p486 = scmp.ne.s32.totalorder %s471, %s485
      %p487 = scmp.eq.s32.totalorder %s41, 0
      %p488 = por %p486, %p487
      %s490 = sadd.s32 %s489, 1
      %p493 = scmp.eq.s32.totalorder %s35, 1
      %p494 = scmp.ne.s32.totalorder %s489, %s491
      %p495 = scmp.eq.s32.totalorder %s35, 0
      %p496 = por %p494, %p495
      %p497 = scmp.ne.s32.totalorder %s489, %s491
      %p498 = scmp.eq.s32.totalorder %s40, 1
      %p499 = por %p497, %p498
      %p500 = scmp.ne.s32.totalorder %s491, %s492
      %p501 = scmp.eq.s32.totalorder %s40, 0
      %p502 = por %p500, %p501
      %p503 = scmp.ne.s32.totalorder %s491, %s492
      %p504 = scmp.eq.s32.totalorder %s41, 1
      %p505 = por %p503, %p504
      %p507 = scmp.ne.s32.totalorder %s492, %s506
      %p508 = scmp.eq.s32.totalorder %s41, 0
      %p509 = por %p507, %p508
      %s511 = sadd.s32 %s510, 1
      %p514 = scmp.eq.s32.totalorder %s35, 1
      %p515 = scmp.ne.s32.totalorder %s510, %s512
      %p516 = scmp.eq.s32.totalorder %s35, 0
      %p517 = por %p515, %p516
      %p518 = scmp.ne.s32.totalorder %s510, %s512
      %p519 = scmp.eq.s32.totalorder %s40, 1
      %p520 = por %p518, %p519
      %p521 = scmp.ne.s32.totalorder %s512, %s513
      %p522 = scmp.eq.s32.totalorder %s40, 0
      %p523 = por %p521, %p522
      %p524 = scmp.ne.s32.totalorder %s512, %s513
      %p525 = scmp.eq.s32.totalorder %s41, 1
      %p526 = por %p524, %p525
      %p528 = scmp.ne.s32.totalorder %s513, %s527
      %p529 = scmp.eq.s32.totalorder %s41, 0
      %p530 = por %p528, %p529
      %s532 = sadd.s32 %s531, 1
      %p535 = scmp.eq.s32.totalorder %s35, 1
      %p536 = scmp.ne.s32.totalorder %s531, %s533
      %p537 = scmp.eq.s32.totalorder %s35, 0
      %p538 = por %p536, %p537
      %p539 = scmp.ne.s32.totalorder %s531, %s533
      %p540 = scmp.eq.s32.totalorder %s40, 1
      %p541 = por %p539, %p540
      %p542 = scmp.ne.s32.totalorder %s533, %s534
      %p543 = scmp.eq.s32.totalorder %s40, 0
      %p544 = por %p542, %p543
      %p545 = scmp.ne.s32.totalorder %s533, %s534
      %p546 = scmp.eq.s32.totalorder %s41, 1
      %p547 = por %p545, %p546
      %p549 = scmp.ne.s32.totalorder %s534, %s548
      %p550 = scmp.eq.s32.totalorder %s41, 0
      %p551 = por %p549, %p550
      %s552 = ssub.s32 %s42, %s54
      %p553 = scmp.eq.s32.totalorder %s552, 0
      %s555 = sadd.s32 %s554, 1
      %s556 = scalar_select %p553, %s554, %s555
      %p559 = pneg %p553
      %p560 = scmp.eq.s32.totalorder %s35, 1
      %p561 = por %p559, %p560
      %p562 = scmp.ne.s32.totalorder %s554, %s557
      %p563 = scmp.eq.s32.totalorder %s35, 0
      %p564 = por %p562, %p563
      %p565 = scmp.ne.s32.totalorder %s554, %s557
      %p566 = scmp.eq.s32.totalorder %s40, 1
      %p567 = por %p565, %p566
      %p568 = scmp.ne.s32.totalorder %s557, %s558
      %p569 = scmp.eq.s32.totalorder %s40, 0
      %p570 = por %p568, %p569
      %p571 = scmp.ne.s32.totalorder %s557, %s558
      %p572 = scmp.eq.s32.totalorder %s41, 1
      %p573 = por %p571, %p572
      %p575 = scmp.ne.s32.totalorder %s558, %s574
      %p576 = scmp.eq.s32.totalorder %s41, 0
      %p577 = por %p575, %p576
      %p578 = scmp.le.s32.totalorder 1, %s35
      %p579 = scmp.lt.s32.totalorder %s35, 3
      %p580 = pnand %p578, %p579
      %p581 = pneg %p580
      // Predicated region
      $region9: #{tpu_custom_call.1} parent=5 // pred_check
        _
      $region10: #{tpu_custom_call.1} parent=5 // pred_check_branch
        %583 = sbr.rel (%p580) target = $region12
      $region11: #{tpu_custom_call.1} parent=5 // pred_region
        %s584 = ssub.s32 %s35, 1
        // Predicated region
        $region13: #{tpu_custom_call.1} parent=11 // pred_check
          %p585 = pneg %p124
        $region14: #{tpu_custom_call.1} parent=11 // pred_check_branch
          %587 = sbr.rel (%p585) target = $region16
        $region15: #{tpu_custom_call.1} parent=11 // pred_region
          _
        $region16: #{tpu_custom_call.1} parent=11 // pred_fallthru
          _
        // Predicated region
        $region17: #{tpu_custom_call.1} parent=11 // pred_check
          %p588 = pneg %p145
        $region18: #{tpu_custom_call.1} parent=11 // pred_check_branch
          %590 = sbr.rel (%p588) target = $region20
        $region19: #{tpu_custom_call.1} parent=11 // pred_region
          _
        $region20: #{tpu_custom_call.1} parent=11 // pred_fallthru
          _
        // Predicated region
        $region21: #{tpu_custom_call.1} parent=11 // pred_check
          %p591 = pneg %p166
        $region22: #{tpu_custom_call.1} parent=11 // pred_check_branch
          %593 = sbr.rel (%p591) target = $region24
        $region23: #{tpu_custom_call.1} parent=11 // pred_region
          _
        $region24: #{tpu_custom_call.1} parent=11 // pred_fallthru
          _
        // Predicated region
        $region25: #{tpu_custom_call.1} parent=11 // pred_check
          %p594 = pneg %p187
        $region26: #{tpu_custom_call.1} parent=11 // pred_check_branch
          %596 = sbr.rel (%p594) target = $region28
        $region27: #{tpu_custom_call.1} parent=11 // pred_region
          _
        $region28: #{tpu_custom_call.1} parent=11 // pred_fallthru
          _
        // Predicated region
        $region29: #{tpu_custom_call.1} parent=11 // pred_check
          %p597 = pneg %p208
        $region30: #{tpu_custom_call.1} parent=11 // pred_check_branch
          %599 = sbr.rel (%p597) target = $region32
        $region31: #{tpu_custom_call.1} parent=11 // pred_region
          _
        $region32: #{tpu_custom_call.1} parent=11 // pred_fallthru
          _
        // Predicated region
        $region33: #{tpu_custom_call.1} parent=11 // pred_check
          %p600 = pneg %p229
        $region34: #{tpu_custom_call.1} parent=11 // pred_check_branch
          %602 = sbr.rel (%p600) target = $region36
        $region35: #{tpu_custom_call.1} parent=11 // pred_region
          %604 = vsyncadd [#allocation4], 0
          %s605 = sshll.u32 %s7, 4
          %s606 = int_to_ptr.hbm [resolvable:$true] %s605
          %s607 = sshll.u32 [#allocation3], 4
          %s608 = int_to_ptr.vmem [resolvable:$true] %s607
          %613 = dma.hbm_to_vmem [thread:$0]  %s606, 2048, %s608, [#allocation4], 128, 128, 8
        $region36: #{tpu_custom_call.1} parent=11 // pred_fallthru
          _
        // Predicated region
        $region37: #{tpu_custom_call.1} parent=11 // pred_check
          %p614 = pneg %p250
        $region38: #{tpu_custom_call.1} parent=11 // pred_check_branch
          %616 = sbr.rel (%p614) target = $region40
        $region39: #{tpu_custom_call.1} parent=11 // pred_region
          _
        $region40: #{tpu_custom_call.1} parent=11 // pred_fallthru
          _
        // Predicated region
        $region41: #{tpu_custom_call.1} parent=11 // pred_check
          %p617 = pneg %p271
        $region42: #{tpu_custom_call.1} parent=11 // pred_check_branch
          %619 = sbr.rel (%p617) target = $region44
        $region43: #{tpu_custom_call.1} parent=11 // pred_region
          _
        $region44: #{tpu_custom_call.1} parent=11 // pred_fallthru
          _
        // Predicated region
        $region45: #{tpu_custom_call.1} parent=11 // pred_check
          %p620 = pneg %p292
        $region46: #{tpu_custom_call.1} parent=11 // pred_check_branch
          %622 = sbr.rel (%p620) target = $region48
        $region47: #{tpu_custom_call.1} parent=11 // pred_region
          _
        $region48: #{tpu_custom_call.1} parent=11 // pred_fallthru
          _
        // Predicated region
        $region49: #{tpu_custom_call.1} parent=11 // pred_check
          %p623 = pneg %p313
        $region50: #{tpu_custom_call.1} parent=11 // pred_check_branch
          %625 = sbr.rel (%p623) target = $region52
        $region51: #{tpu_custom_call.1} parent=11 // pred_region
          %627 = vsyncadd [#allocation7], 0
          %s628 = sshll.u32 %s11, 4
          %s629 = int_to_ptr.hbm [resolvable:$true] %s628
          %s630 = sshll.u32 [#allocation6], 4
          %s631 = int_to_ptr.vmem [resolvable:$true] %s630
          %636 = dma.hbm_to_vmem [thread:$0]  %s629, 2048, %s631, [#allocation7], 128, 128, 8
        $region52: #{tpu_custom_call.1} parent=11 // pred_fallthru
          _
        // Predicated region
        $region53: #{tpu_custom_call.1} parent=11 // pred_check
          %p637 = pneg %p334
        $region54: #{tpu_custom_call.1} parent=11 // pred_check_branch
          %639 = sbr.rel (%p637) target = $region56
        $region55: #{tpu_custom_call.1} parent=11 // pred_region
          _
        $region56: #{tpu_custom_call.1} parent=11 // pred_fallthru
          _
        // Predicated region
        $region57: #{tpu_custom_call.1} parent=11 // pred_check
          %p640 = pneg %p355
        $region58: #{tpu_custom_call.1} parent=11 // pred_check_branch
          %642 = sbr.rel (%p640) target = $region60
        $region59: #{tpu_custom_call.1} parent=11 // pred_region
          %644 = vsyncadd [#allocation7], 0
          %s645 = sshll.u32 %s13, 4
          %s646 = int_to_ptr.hbm [resolvable:$true] %s645
          %s647 = sshll.u32 [#allocation8], 4
          %s648 = int_to_ptr.vmem [resolvable:$true] %s647
          %653 = dma.hbm_to_vmem [thread:$0]  %s646, 2048, %s648, [#allocation7], 128, 128, 8
        $region60: #{tpu_custom_call.1} parent=11 // pred_fallthru
          _
        // Predicated region
        $region61: #{tpu_custom_call.1} parent=11 // pred_check
          %p654 = pneg %p376
        $region62: #{tpu_custom_call.1} parent=11 // pred_check_branch
          %656 = sbr.rel (%p654) target = $region64
        $region63: #{tpu_custom_call.1} parent=11 // pred_region
          _
        $region64: #{tpu_custom_call.1} parent=11 // pred_fallthru
          _
        // Predicated region
        $region65: #{tpu_custom_call.1} parent=11 // pred_check
          %p657 = pneg %p397
        $region66: #{tpu_custom_call.1} parent=11 // pred_check_branch
          %659 = sbr.rel (%p657) target = $region68
        $region67: #{tpu_custom_call.1} parent=11 // pred_region
          _
        $region68: #{tpu_custom_call.1} parent=11 // pred_fallthru
          _
        // Predicated region
        $region69: #{tpu_custom_call.1} parent=11 // pred_check
          %p660 = pneg %p418
        $region70: #{tpu_custom_call.1} parent=11 // pred_check_branch
          %662 = sbr.rel (%p660) target = $region72
        $region71: #{tpu_custom_call.1} parent=11 // pred_region
          _
        $region72: #{tpu_custom_call.1} parent=11 // pred_fallthru
          _
        // Predicated region
        $region73: #{tpu_custom_call.1} parent=11 // pred_check
          %p663 = pneg %p439
        $region74: #{tpu_custom_call.1} parent=11 // pred_check_branch
          %665 = sbr.rel (%p663) target = $region76
        $region75: #{tpu_custom_call.1} parent=11 // pred_region
          %667 = vsyncadd [#allocation10], 0
          %s668 = sshll.u32 %s17, 4
          %s669 = int_to_ptr.hbm [resolvable:$true] %s668
          %s670 = sshll.u32 [#allocation9], 4
          %s671 = int_to_ptr.vmem [resolvable:$true] %s670
          %676 = dma.hbm_to_vmem [thread:$0]  %s669, 2048, %s671, [#allocation10], 128, 128, 8
        $region76: #{tpu_custom_call.1} parent=11 // pred_fallthru
          _
        // Predicated region
        $region77: #{tpu_custom_call.1} parent=11 // pred_check
          %p677 = pneg %p460
        $region78: #{tpu_custom_call.1} parent=11 // pred_check_branch
          %679 = sbr.rel (%p677) target = $region80
        $region79: #{tpu_custom_call.1} parent=11 // pred_region
          _
        $region80: #{tpu_custom_call.1} parent=11 // pred_fallthru
          _
        // Predicated region
        $region81: #{tpu_custom_call.1} parent=11 // pred_check
          %p680 = pneg %p481
        $region82: #{tpu_custom_call.1} parent=11 // pred_check_branch
          %682 = sbr.rel (%p680) target = $region84
        $region83: #{tpu_custom_call.1} parent=11 // pred_region
          _
        $region84: #{tpu_custom_call.1} parent=11 // pred_fallthru
          _
        // Predicated region
        $region85: #{tpu_custom_call.1} parent=11 // pred_check
          %p683 = pneg %p502
        $region86: #{tpu_custom_call.1} parent=11 // pred_check_branch
          %685 = sbr.rel (%p683) target = $region88
        $region87: #{tpu_custom_call.1} parent=11 // pred_region
          _
        $region88: #{tpu_custom_call.1} parent=11 // pred_fallthru
          _
        // Predicated region
        $region89: #{tpu_custom_call.1} parent=11 // pred_check
          %p686 = pneg %p523
        $region90: #{tpu_custom_call.1} parent=11 // pred_check_branch
          %688 = sbr.rel (%p686) target = $region92
        $region91: #{tpu_custom_call.1} parent=11 // pred_region
          %690 = vsyncadd [#allocation10], 0
          %s691 = sshll.u32 %s21, 4
          %s692 = int_to_ptr.hbm [resolvable:$true] %s691
          %s693 = sshll.u32 [#allocation11], 4
          %s694 = int_to_ptr.vmem [resolvable:$true] %s693
          %699 = dma.hbm_to_vmem [thread:$0]  %s692, 2048, %s694, [#allocation10], 128, 128, 8
        $region92: #{tpu_custom_call.1} parent=11 // pred_fallthru
          _
        // Predicated region
        $region93: #{tpu_custom_call.1} parent=11 // pred_check
          %p700 = pneg %p544
        $region94: #{tpu_custom_call.1} parent=11 // pred_check_branch
          %702 = sbr.rel (%p700) target = $region96
        $region95: #{tpu_custom_call.1} parent=11 // pred_region
          _
        $region96: #{tpu_custom_call.1} parent=11 // pred_fallthru
          _
      $region12: #{tpu_custom_call.1} parent=5 // pred_fallthru
        _
      %p703 = scmp.lt.s32.totalorder %s35, 2
      // Predicated region
      $region97: #{tpu_custom_call.1} parent=5 // pred_check
        %p704 = pneg %p703
      $region98: #{tpu_custom_call.1} parent=5 // pred_check_branch
        %706 = sbr.rel (%p704) target = $region100
      $region99: #{tpu_custom_call.1} parent=5 // pred_region
        // Predicated region
        $region101: #{tpu_custom_call.1} parent=99 // pred_check
          %p707 = pneg %p69
        $region102: #{tpu_custom_call.1} parent=99 // pred_check_branch
          %709 = sbr.rel (%p707) target = $region104
        $region103: #{tpu_custom_call.1} parent=99 // pred_region
          %p710 = scmp.lt.s32.totalorder %s42, 1
          %s711 = scalar_select %p710, %s42, 1
          %p712 = scmp.lt.s32.totalorder %s43, 0
          %s713 = scalar_select %p712, %s43, 0
          %s714 = sadd.s32 %s713, %s711
          %s715 = smul.addr %s714, 8
          %s716 = scalar_lea.vmem %s0, %s715
        $region104: #{tpu_custom_call.1} parent=99 // pred_fallthru
          _
        // Predicated region
        $region105: #{tpu_custom_call.1} parent=99 // pred_check
          %p717 = pneg %p97
        $region106: #{tpu_custom_call.1} parent=99 // pred_check_branch
          %719 = sbr.rel (%p717) target = $region108
        $region107: #{tpu_custom_call.1} parent=99 // pred_region
          %p720 = scmp.lt.s32.totalorder %s42, 1
          %s721 = scalar_select %p720, %s42, 1
          %p722 = scmp.lt.s32.totalorder %s43, 0
          %s723 = scalar_select %p722, %s43, 0
          %s724 = sadd.s32 %s723, %s721
          %s725 = smul.addr %s724, 8
          %s726 = scalar_lea.vmem %s1, %s725
        $region108: #{tpu_custom_call.1} parent=99 // pred_fallthru
          _
      $region100: #{tpu_custom_call.1} parent=5 // pred_fallthru
        _
      %p727 = scmp.le.s32.totalorder 1, %s35
      %p728 = scmp.lt.s32.totalorder %s35, 3
      %p729 = pnand %p727, %p728
      %p730 = pneg %p729
      // Predicated region
      $region109: #{tpu_custom_call.1} parent=5 // pred_check
        _
      $region110: #{tpu_custom_call.1} parent=5 // pred_check_branch
        %732 = sbr.rel (%p729) target = $region112
      $region111: #{tpu_custom_call.1} parent=5 // pred_region
        %s733 = ssub.s32 %s35, 1
        // Predicated region
        $region113: #{tpu_custom_call.1} parent=111 // pred_check
          %p734 = pneg %p229
        $region114: #{tpu_custom_call.1} parent=111 // pred_check_branch
          %736 = sbr.rel (%p734) target = $region116
        $region115: #{tpu_custom_call.1} parent=111 // pred_region
          %738 = dma.done [#allocation4], 2048
        $region116: #{tpu_custom_call.1} parent=111 // pred_fallthru
          _
        // Predicated region
        $region117: #{tpu_custom_call.1} parent=111 // pred_check
          %p739 = pneg %p313
        $region118: #{tpu_custom_call.1} parent=111 // pred_check_branch
          %741 = sbr.rel (%p739) target = $region120
        $region119: #{tpu_custom_call.1} parent=111 // pred_region
          %743 = dma.done [#allocation7], 2048
        $region120: #{tpu_custom_call.1} parent=111 // pred_fallthru
          _
        // Predicated region
        $region121: #{tpu_custom_call.1} parent=111 // pred_check
          %p744 = pneg %p355
        $region122: #{tpu_custom_call.1} parent=111 // pred_check_branch
          %746 = sbr.rel (%p744) target = $region124
        $region123: #{tpu_custom_call.1} parent=111 // pred_region
          %748 = dma.done [#allocation7], 2048
        $region124: #{tpu_custom_call.1} parent=111 // pred_fallthru
          _
        // Predicated region
        $region125: #{tpu_custom_call.1} parent=111 // pred_check
          %p749 = pneg %p439
        $region126: #{tpu_custom_call.1} parent=111 // pred_check_branch
          %751 = sbr.rel (%p749) target = $region128
        $region127: #{tpu_custom_call.1} parent=111 // pred_region
          %753 = dma.done [#allocation10], 2048
        $region128: #{tpu_custom_call.1} parent=111 // pred_fallthru
          _
        // Predicated region
        $region129: #{tpu_custom_call.1} parent=111 // pred_check
          %p754 = pneg %p523
        $region130: #{tpu_custom_call.1} parent=111 // pred_check_branch
          %756 = sbr.rel (%p754) target = $region132
        $region131: #{tpu_custom_call.1} parent=111 // pred_region
          %758 = dma.done [#allocation10], 2048
        $region132: #{tpu_custom_call.1} parent=111 // pred_fallthru
          _
        %p759 = scmp.lt.s32.totalorder %s44, 1
        %s760 = scalar_select %p759, %s44, 1
        %p761 = scmp.lt.s32.totalorder %s45, 0
        %s762 = scalar_select %p761, %s45, 0
        %s763 = sadd.s32 %s762, %s760
        %s764 = smul.addr %s763, 8
        %s765 = scalar_lea.vmem %s0, %s764
        %p766 = pneg %p75
        %p767 = pneg %p72
        %p768 = scmp.lt.s32.totalorder %s44, 1
        %s769 = scalar_select %p768, %s44, 1
        %p770 = scmp.lt.s32.totalorder %s45, 0
        %s771 = scalar_select %p770, %s45, 0
        %s772 = sadd.s32 %s771, %s769
        %s773 = smul.addr %s772, 8
        %s774 = scalar_lea.vmem %s1, %s773
        %p775 = pneg %p103
        %p776 = pneg %p100
        %p777 = pneg %p124
        %p778 = pneg %p121
        %p779 = pneg %p145
        %p780 = pneg %p142
        %p781 = pneg %p166
        %p782 = pneg %p163
        %p783 = pneg %p187
        %p784 = pneg %p184
        %p785 = pneg %p208
        %p786 = pneg %p205
        %p787 = pneg %p229
        %p788 = pneg %p226
        %p789 = pneg %p250
        %p790 = pneg %p247
        %p791 = pneg %p271
        %p792 = pneg %p268
        %p793 = pneg %p292
        %p794 = pneg %p289
        %p795 = pneg %p313
        %p796 = pneg %p310
        %p797 = pneg %p334
        %p798 = pneg %p331
        %p799 = pneg %p355
        %p800 = pneg %p352
        %p801 = pneg %p376
        %p802 = pneg %p373
        %p803 = pneg %p397
        %p804 = pneg %p394
        %p805 = pneg %p418
        %p806 = pneg %p415
        %p807 = pneg %p439
        %p808 = pneg %p436
        %p809 = pneg %p460
        %p810 = pneg %p457
        %p811 = pneg %p481
        %p812 = pneg %p478
        %p813 = pneg %p502
        %p814 = pneg %p499
        %p815 = pneg %p523
        %p816 = pneg %p520
        %p817 = pneg %p544
        %p818 = pneg %p541
        %p819 = pneg %p570
        %p820 = pneg %p567
        %s821 = sand.u32 %s557, 1
        %s822 = scalar_lea.sflag [#allocation5], %s821
        %s823 = sand.u32 %s557, 1
        %s824 = scalar_lea.vmem [#allocation12], %s823
        %p825 = scmp.lt.s32.totalorder %s44, 1
        %s826 = scalar_select %p825, %s44, 1
        %p827 = scmp.lt.s32.totalorder %s45, 0
        %s828 = scalar_select %p827, %s45, 0
        %s829 = sadd.s32 %s828, %s826
        %s830 = smul.addr %s829, 8
        %s831 = scalar_lea.vmem %s0, %s830
        %p832 = scmp.lt.s32.totalorder %s44, 1
        %s833 = scalar_select %p832, %s44, 1
        %p834 = scmp.lt.s32.totalorder %s45, 0
        %s835 = scalar_select %p834, %s45, 0
        %s836 = sadd.s32 %s835, %s833
        %s837 = smul.addr %s836, 8
        %s838 = scalar_lea.vmem %s1, %s837
        %p839 = scmp.eq.s32.totalorder %s45, 0
        // Predicated region
        $region133: #{tpu_custom_call.1} parent=111 // pred_check
          %p840 = pneg %p839
        $region134: #{tpu_custom_call.1} parent=111 // pred_check_branch
          %842 = sbr.rel (%p840) target = $region136
        $region135: #{tpu_custom_call.1} parent=111 // pred_region
          %843 = vst [vmem:[#allocation2] sm:$0x1] 0.0
        $region136: #{tpu_custom_call.1} parent=111 // pred_fallthru
          _
        %v844 = vld [vmem:[%s831] sm:$0xff]
        %v845 = vld [vmem:[%s2] sm:$0x7]
        %v846 = vld [vmem:[%s838] sm:$0xff]
        %v847 = vld [vmem:[%s3] sm:$0x7]
        %vm848 = vcmask 23552
        %v850 = vsel %vm848, %v846, 0
        %vm852 = vcmask 1042432
        %v854 = vsel %vm852, %v847, 0
        %856 = vmatpush.msra.mxu0 0.0
        %857 = vmatpush.msra.mxu0 0.0
        %858 = vmatpush.msra.mxu0 0.0
        %859 = vmatpush.msra.mxu0 0.0
        %860 = vmatpush.msra.mxu0 0.0
        %861 = vmatpush.msra.mxu0 0.0
        %862 = vmatpush.msra.mxu0 0.0
        %863 = vmatpush.msra.mxu0 0.0
        %864 = vmatpush.msra.mxu0 0.0
        %865 = vmatpush.msra.mxu0 0.0
        %866 = vmatpush.msra.mxu0 0.0
        %867 = vmatpush.msra.mxu0 0.0
        %868 = vmatpush.msra.mxu0 0.0
        %869 = vmatpush.msra.mxu0 0.0
        %870 = vmatpush.msra.mxu0 0.0
        %871 = vmatpush.msra.mxu0 %v854
        %872 = vmatmul.f32.gmra.mxu0 %v850
        %v873 = vpop.f32.mrf.mxu0
        %v874 = vadd.f32 0.0, %v873
        %875 = vdwg.mxu0
        %v877 = vsel %vm848, %v844, 0
        %v880 = vsel %vm852, %v845, 0
        %882 = vmatpush.msra.mxu0 0.0
        %883 = vmatpush.msra.mxu0 0.0
        %884 = vmatpush.msra.mxu0 0.0
        %885 = vmatpush.msra.mxu0 0.0
        %886 = vmatpush.msra.mxu0 0.0
        %887 = vmatpush.msra.mxu0 0.0
        %888 = vmatpush.msra.mxu0 0.0
        %889 = vmatpush.msra.mxu0 0.0
        %890 = vmatpush.msra.mxu0 0.0
        %891 = vmatpush.msra.mxu0 0.0
        %892 = vmatpush.msra.mxu0 0.0
        %893 = vmatpush.msra.mxu0 0.0
        %894 = vmatpush.msra.mxu0 0.0
        %895 = vmatpush.msra.mxu0 0.0
        %896 = vmatpush.msra.mxu0 0.0
        %897 = vmatpush.msra.mxu0 %v880
        %898 = vmatmul.f32.gmra.mxu0 %v877
        %v899 = vpop.f32.mrf.mxu0
        %v900 = vadd.f32 %v874, %v899
        %901 = vdwg.mxu0
        %v902 = vld [vmem:[%s4] sm:$0x1]
        %v904 = vperm.slane %v902, 0
        %v906 = vadd.f32 %v900, %v904
        %v907 = vld [vmem:[%s5] sm:$0x1]
        %v908 = vld [vmem:[%s6] sm:$0x1]
        %909 = vadd.xlane.f32.xlu0 %v906
        %v910 = vpop.xlane.xlu0 %909
        %v911 = vmul.f32 %v910, 0.01
        %v912 = vmul.f32 %v906, %v906
        %913 = vadd.xlane.f32.xlu0 %v912
        %v914 = vpop.xlane.xlu0 %913
        %v915 = vmul.f32 %v914, 0.01
        %v916 = vmul.f32 %v911, %v911
        %v917 = vsub.f32 %v915, %v916
        %v918 = vsub.f32 %v906, %v911
        %v919 = vadd.f32 %v917, 1e-05
        %v920 = vrsqrt.pop %v919
        %v921 = vmul.f32 %v920, %v919
        %v922 = vmul.f32 %v921, %v920
        %v923 = vmul.f32 0.5, %v922
        %v924 = vsub.f32 1.5, %v923
        %v925 = vmul.f32 %v920, %v924
        %vm926 = vweird.f32 %v919
        %vm927 = vweird.f32 %v920
        %vm928 = vmor %vm926, %vm927
        %v929 = vsel %vm928, %v920, %v925
        %v930 = vmul.f32 %v918, %v929
        %v932 = vperm.slane %v907, 0
        %v934 = vmul.f32 %v930, %v932
        %v936 = vperm.slane %v908, 0
        %v938 = vadd.f32 %v934, %v936
        %v939 = vmax.f32 %v938, 0.0
        %v940 = vld [vmem:[#allocation3] sm:$0xff]
        %v941 = vld [vmem:[#allocation3 + $0x8] sm:$0xff]
        %v942 = vld [vmem:[#allocation3 + $0x10] sm:$0xff]
        %v943 = vld [vmem:[#allocation3 + $0x18] sm:$0xff]
        %v944 = vld [vmem:[#allocation3 + $0x20] sm:$0xff]
        %v945 = vld [vmem:[#allocation3 + $0x28] sm:$0xff]
        %v946 = vld [vmem:[#allocation3 + $0x30] sm:$0xff]
        %v947 = vld [vmem:[#allocation3 + $0x38] sm:$0xff]
        %v948 = vld [vmem:[#allocation3 + $0x40] sm:$0xff]
        %v949 = vld [vmem:[#allocation3 + $0x48] sm:$0xff]
        %v950 = vld [vmem:[#allocation3 + $0x50] sm:$0xff]
        %v951 = vld [vmem:[#allocation3 + $0x58] sm:$0xff]
        %v952 = vld [vmem:[#allocation3 + $0x60] sm:$0xff]
        %v953 = vld [vmem:[#allocation3 + $0x68] sm:$0xff]
        %v954 = vld [vmem:[#allocation3 + $0x70] sm:$0xff]
        %v955 = vld [vmem:[#allocation3 + $0x78] sm:$0xff]
        %v956 = vld [vmem:[%s8] sm:$0x1]
        %v958 = vperm.slane %v956, 0
        %960 = vmatpush.msra.mxu0 %v955
        %961 = vmatpush.msra.mxu0 %v954
        %962 = vmatpush.msra.mxu0 %v953
        %963 = vmatpush.msra.mxu0 %v952
        %964 = vmatpush.msra.mxu0 %v951
        %965 = vmatpush.msra.mxu0 %v950
        %966 = vmatpush.msra.mxu0 %v949
        %967 = vmatpush.msra.mxu0 %v948
        %968 = vmatpush.msra.mxu0 %v947
        %969 = vmatpush.msra.mxu0 %v946
        %970 = vmatpush.msra.mxu0 %v945
        %971 = vmatpush.msra.mxu0 %v944
        %972 = vmatpush.msra.mxu0 %v943
        %973 = vmatpush.msra.mxu0 %v942
        %974 = vmatpush.msra.mxu0 %v941
        %975 = vmatpush.msra.mxu0 %v940
        %976 = vmatmul.f32.gmra.mxu0 %v939
        %v977 = vpop.f32.mrf.mxu0
        %v978 = vadd.f32 %v958, %v977
        %979 = vdwg.mxu0
        %v980 = vld [vmem:[%s9] sm:$0x1]
        %v981 = vld [vmem:[%s10] sm:$0x1]
        %982 = vadd.xlane.f32.xlu0 %v978
        %v983 = vpop.xlane.xlu0 %982
        %v984 = vmul.f32 %v983, 0.01
        %v985 = vmul.f32 %v978, %v978
        %986 = vadd.xlane.f32.xlu0 %v985
        %v987 = vpop.xlane.xlu0 %986
        %v988 = vmul.f32 %v987, 0.01
        %v989 = vmul.f32 %v984, %v984
        %v990 = vsub.f32 %v988, %v989
        %v991 = vsub.f32 %v978, %v984
        %v992 = vadd.f32 %v990, 1e-05
        %v993 = vrsqrt.pop %v992
        %v994 = vmul.f32 %v993, %v992
        %v995 = vmul.f32 %v994, %v993
        %v996 = vmul.f32 0.5, %v995
        %v997 = vsub.f32 1.5, %v996
        %v998 = vmul.f32 %v993, %v997
        %vm999 = vweird.f32 %v992
        %vm1000 = vweird.f32 %v993
        %vm1001 = vmor %vm999, %vm1000
        %v1002 = vsel %vm1001, %v993, %v998
        %v1003 = vmul.f32 %v991, %v1002
        %v1005 = vperm.slane %v980, 0
        %v1007 = vmul.f32 %v1003, %v1005
        %v1009 = vperm.slane %v981, 0
        %v1011 = vadd.f32 %v1007, %v1009
        %v1012 = vmax.f32 %v1011, 0.0
        %v1013 = vld [vmem:[#allocation6] sm:$0xff]
        %v1014 = vld [vmem:[#allocation6 + $0x8] sm:$0xff]
        %v1015 = vld [vmem:[#allocation6 + $0x10] sm:$0xff]
        %v1016 = vld [vmem:[#allocation6 + $0x18] sm:$0xff]
        %v1017 = vld [vmem:[#allocation6 + $0x20] sm:$0xff]
        %v1018 = vld [vmem:[#allocation6 + $0x28] sm:$0xff]
        %v1019 = vld [vmem:[#allocation6 + $0x30] sm:$0xff]
        %v1020 = vld [vmem:[#allocation6 + $0x38] sm:$0xff]
        %v1021 = vld [vmem:[#allocation6 + $0x40] sm:$0xff]
        %v1022 = vld [vmem:[#allocation6 + $0x48] sm:$0xff]
        %v1023 = vld [vmem:[#allocation6 + $0x50] sm:$0xff]
        %v1024 = vld [vmem:[#allocation6 + $0x58] sm:$0xff]
        %v1025 = vld [vmem:[#allocation6 + $0x60] sm:$0xff]
        %v1026 = vld [vmem:[#allocation6 + $0x68] sm:$0xff]
        %v1027 = vld [vmem:[#allocation6 + $0x70] sm:$0xff]
        %v1028 = vld [vmem:[#allocation6 + $0x78] sm:$0xff]
        %v1029 = vld [vmem:[%s12] sm:$0x1]
        %v1031 = vperm.slane %v1029, 0
        %1033 = vmatpush.msra.mxu0 %v1028
        %1034 = vmatpush.msra.mxu0 %v1027
        %1035 = vmatpush.msra.mxu0 %v1026
        %1036 = vmatpush.msra.mxu0 %v1025
        %1037 = vmatpush.msra.mxu0 %v1024
        %1038 = vmatpush.msra.mxu0 %v1023
        %1039 = vmatpush.msra.mxu0 %v1022
        %1040 = vmatpush.msra.mxu0 %v1021
        %1041 = vmatpush.msra.mxu0 %v1020
        %1042 = vmatpush.msra.mxu0 %v1019
        %1043 = vmatpush.msra.mxu0 %v1018
        %1044 = vmatpush.msra.mxu0 %v1017
        %1045 = vmatpush.msra.mxu0 %v1016
        %1046 = vmatpush.msra.mxu0 %v1015
        %1047 = vmatpush.msra.mxu0 %v1014
        %1048 = vmatpush.msra.mxu0 %v1013
        %1049 = vmatmul.f32.gmra.mxu0 %v1012
        %v1050 = vpop.f32.mrf.mxu0
        %v1051 = vadd.f32 %v1031, %v1050
        %1052 = vdwg.mxu0
        %v1053 = vld [vmem:[#allocation2] sm:$0x1]
        %v1054 = vrot.slane %v1051, 4
        %v1055 = vadd.f32 %v1051, %v1054
        %v1056 = vrot.slane %v1055, 2
        %v1057 = vadd.f32 %v1055, %v1056
        %v1058 = vrot.slane %v1057, 1
        %v1059 = vadd.f32 %v1057, %v1058
        %v1060 = vadd.f32 %v1053, %v1059
        %1061 = vst [vmem:[#allocation2] sm:$0x1] %v1060
        // Predicated region
        $region137: #{tpu_custom_call.1} parent=111 // pred_check
          %p1062 = pneg %p839
        $region138: #{tpu_custom_call.1} parent=111 // pred_check_branch
          %1064 = sbr.rel (%p1062) target = $region140
        $region139: #{tpu_custom_call.1} parent=111 // pred_region
          %v1065 = vld [vmem:[#allocation2] sm:$0x1]
          %v1066 = vmul.f32 %v1065, 0.125
          %v1067 = vld [vmem:[#allocation8] sm:$0xff]
          %v1068 = vld [vmem:[#allocation8 + $0x8] sm:$0xff]
          %v1069 = vld [vmem:[#allocation8 + $0x10] sm:$0xff]
          %v1070 = vld [vmem:[#allocation8 + $0x18] sm:$0xff]
          %v1071 = vld [vmem:[#allocation8 + $0x20] sm:$0xff]
          %v1072 = vld [vmem:[#allocation8 + $0x28] sm:$0xff]
          %v1073 = vld [vmem:[#allocation8 + $0x30] sm:$0xff]
          %v1074 = vld [vmem:[#allocation8 + $0x38] sm:$0xff]
          %v1075 = vld [vmem:[#allocation8 + $0x40] sm:$0xff]
          %v1076 = vld [vmem:[#allocation8 + $0x48] sm:$0xff]
          %v1077 = vld [vmem:[#allocation8 + $0x50] sm:$0xff]
          %v1078 = vld [vmem:[#allocation8 + $0x58] sm:$0xff]
          %v1079 = vld [vmem:[#allocation8 + $0x60] sm:$0xff]
          %v1080 = vld [vmem:[#allocation8 + $0x68] sm:$0xff]
          %v1081 = vld [vmem:[#allocation8 + $0x70] sm:$0xff]
          %v1082 = vld [vmem:[#allocation8 + $0x78] sm:$0xff]
          %v1083 = vld [vmem:[%s14] sm:$0x1]
          %1084 = vmatpush.msra.mxu0 %v1082
          %1085 = vmatpush.msra.mxu0 %v1081
          %1086 = vmatpush.msra.mxu0 %v1080
          %1087 = vmatpush.msra.mxu0 %v1079
          %1088 = vmatpush.msra.mxu0 %v1078
          %1089 = vmatpush.msra.mxu0 %v1077
          %1090 = vmatpush.msra.mxu0 %v1076
          %1091 = vmatpush.msra.mxu0 %v1075
          %1092 = vmatpush.msra.mxu0 %v1074
          %1093 = vmatpush.msra.mxu0 %v1073
          %1094 = vmatpush.msra.mxu0 %v1072
          %1095 = vmatpush.msra.mxu0 %v1071
          %1096 = vmatpush.msra.mxu0 %v1070
          %1097 = vmatpush.msra.mxu0 %v1069
          %1098 = vmatpush.msra.mxu0 %v1068
          %1099 = vmatpush.msra.mxu0 %v1067
          %1100 = vmatmul.f32.gmra.mxu0 %v1066
          %v1101 = vpop.f32.mrf.mxu0
          %v1102 = vadd.f32 %v1083, %v1101
          %1103 = vdwg.mxu0
          %v1104 = vld [vmem:[%s15] sm:$0x1]
          %v1105 = vld [vmem:[%s16] sm:$0x1]
          %vm1106 = vcmask 1040384
          %v1107 = vsel %vm1106, %v1102, 0.0
          %1108 = vadd.xlane.f32.xlu0 %v1107
          %v1109 = vpop.xlane.xlu0 %1108
          %v1110 = vmul.f32 %v1109, 0.01
          %v1111 = vmul.f32 %v1102, %v1102
          %v1112 = vsel %vm1106, %v1111, 0.0
          %1113 = vadd.xlane.f32.xlu0 %v1112
          %v1114 = vpop.xlane.xlu0 %1113
          %v1115 = vmul.f32 %v1114, 0.01
          %v1116 = vmul.f32 %v1110, %v1110
          %v1117 = vsub.f32 %v1115, %v1116
          %v1118 = vsub.f32 %v1102, %v1110
          %v1119 = vadd.f32 %v1117, 1e-05
          %v1120 = vrsqrt.pop %v1119
          %v1121 = vmul.f32 %v1120, %v1119
          %v1122 = vmul.f32 %v1121, %v1120
          %v1123 = vmul.f32 0.5, %v1122
          %v1124 = vsub.f32 1.5, %v1123
          %v1125 = vmul.f32 %v1120, %v1124
          %vm1126 = vweird.f32 %v1119
          %vm1127 = vweird.f32 %v1120
          %vm1128 = vmor %vm1126, %vm1127
          %v1129 = vsel %vm1128, %v1120, %v1125
          %v1130 = vmul.f32 %v1118, %v1129
          %v1131 = vmul.f32 %v1130, %v1104
          %v1132 = vadd.f32 %v1131, %v1105
          %v1133 = vmax.f32 %v1132, 0.0
          %v1134 = vld [vmem:[#allocation9] sm:$0xff]
          %v1135 = vld [vmem:[#allocation9 + $0x8] sm:$0xff]
          %v1136 = vld [vmem:[#allocation9 + $0x10] sm:$0xff]
          %v1137 = vld [vmem:[#allocation9 + $0x18] sm:$0xff]
          %v1138 = vld [vmem:[#allocation9 + $0x20] sm:$0xff]
          %v1139 = vld [vmem:[#allocation9 + $0x28] sm:$0xff]
          %v1140 = vld [vmem:[#allocation9 + $0x30] sm:$0xff]
          %v1141 = vld [vmem:[#allocation9 + $0x38] sm:$0xff]
          %v1142 = vld [vmem:[#allocation9 + $0x40] sm:$0xff]
          %v1143 = vld [vmem:[#allocation9 + $0x48] sm:$0xff]
          %v1144 = vld [vmem:[#allocation9 + $0x50] sm:$0xff]
          %v1145 = vld [vmem:[#allocation9 + $0x58] sm:$0xff]
          %v1146 = vld [vmem:[#allocation9 + $0x60] sm:$0xff]
          %v1147 = vld [vmem:[#allocation9 + $0x68] sm:$0xff]
          %v1148 = vld [vmem:[#allocation9 + $0x70] sm:$0xff]
          %v1149 = vld [vmem:[#allocation9 + $0x78] sm:$0xff]
          %v1150 = vld [vmem:[%s18] sm:$0x1]
          %1151 = vmatpush.msra.mxu0 %v1149
          %1152 = vmatpush.msra.mxu0 %v1148
          %1153 = vmatpush.msra.mxu0 %v1147
          %1154 = vmatpush.msra.mxu0 %v1146
          %1155 = vmatpush.msra.mxu0 %v1145
          %1156 = vmatpush.msra.mxu0 %v1144
          %1157 = vmatpush.msra.mxu0 %v1143
          %1158 = vmatpush.msra.mxu0 %v1142
          %1159 = vmatpush.msra.mxu0 %v1141
          %1160 = vmatpush.msra.mxu0 %v1140
          %1161 = vmatpush.msra.mxu0 %v1139
          %1162 = vmatpush.msra.mxu0 %v1138
          %1163 = vmatpush.msra.mxu0 %v1137
          %1164 = vmatpush.msra.mxu0 %v1136
          %1165 = vmatpush.msra.mxu0 %v1135
          %1166 = vmatpush.msra.mxu0 %v1134
          %1167 = vmatmul.f32.gmra.mxu0 %v1133
          %v1168 = vpop.f32.mrf.mxu0
          %v1169 = vadd.f32 %v1150, %v1168
          %1170 = vdwg.mxu0
          %v1171 = vld [vmem:[%s19] sm:$0x1]
          %v1172 = vld [vmem:[%s20] sm:$0x1]
          %v1173 = vsel %vm1106, %v1169, 0.0
          %1174 = vadd.xlane.f32.xlu0 %v1173
          %v1175 = vpop.xlane.xlu0 %1174
          %v1176 = vmul.f32 %v1175, 0.01
          %v1177 = vmul.f32 %v1169, %v1169
          %v1178 = vsel %vm1106, %v1177, 0.0
          %1179 = vadd.xlane.f32.xlu0 %v1178
          %v1180 = vpop.xlane.xlu0 %1179
          %v1181 = vmul.f32 %v1180, 0.01
          %v1182 = vmul.f32 %v1176, %v1176
          %v1183 = vsub.f32 %v1181, %v1182
          %v1184 = vsub.f32 %v1169, %v1176
          %v1185 = vadd.f32 %v1183, 1e-05
          %v1186 = vrsqrt.pop %v1185
          %v1187 = vmul.f32 %v1186, %v1185
          %v1188 = vmul.f32 %v1187, %v1186
          %v1189 = vmul.f32 0.5, %v1188
          %v1190 = vsub.f32 1.5, %v1189
          %v1191 = vmul.f32 %v1186, %v1190
          %vm1192 = vweird.f32 %v1185
          %vm1193 = vweird.f32 %v1186
          %vm1194 = vmor %vm1192, %vm1193
          %v1195 = vsel %vm1194, %v1186, %v1191
          %v1196 = vmul.f32 %v1184, %v1195
          %v1197 = vmul.f32 %v1196, %v1171
          %v1198 = vadd.f32 %v1197, %v1172
          %v1199 = vmax.f32 %v1198, 0.0
          %v1200 = vld [vmem:[#allocation11] sm:$0xff]
          %v1201 = vld [vmem:[#allocation11 + $0x8] sm:$0xff]
          %v1202 = vld [vmem:[#allocation11 + $0x10] sm:$0xff]
          %v1203 = vld [vmem:[#allocation11 + $0x18] sm:$0xff]
          %v1204 = vld [vmem:[#allocation11 + $0x20] sm:$0xff]
          %v1205 = vld [vmem:[#allocation11 + $0x28] sm:$0xff]
          %v1206 = vld [vmem:[#allocation11 + $0x30] sm:$0xff]
          %v1207 = vld [vmem:[#allocation11 + $0x38] sm:$0xff]
          %v1208 = vld [vmem:[#allocation11 + $0x40] sm:$0xff]
          %v1209 = vld [vmem:[#allocation11 + $0x48] sm:$0xff]
          %v1210 = vld [vmem:[#allocation11 + $0x50] sm:$0xff]
          %v1211 = vld [vmem:[#allocation11 + $0x58] sm:$0xff]
          %v1212 = vld [vmem:[#allocation11 + $0x60] sm:$0xff]
          %v1213 = vld [vmem:[#allocation11 + $0x68] sm:$0xff]
          %v1214 = vld [vmem:[#allocation11 + $0x70] sm:$0xff]
          %v1215 = vld [vmem:[#allocation11 + $0x78] sm:$0xff]
          %v1216 = vld [vmem:[%s22] sm:$0x1]
          %1217 = vmatpush.msra.mxu0 %v1215
          %1218 = vmatpush.msra.mxu0 %v1214
          %1219 = vmatpush.msra.mxu0 %v1213
          %1220 = vmatpush.msra.mxu0 %v1212
          %1221 = vmatpush.msra.mxu0 %v1211
          %1222 = vmatpush.msra.mxu0 %v1210
          %1223 = vmatpush.msra.mxu0 %v1209
          %1224 = vmatpush.msra.mxu0 %v1208
          %1225 = vmatpush.msra.mxu0 %v1207
          %1226 = vmatpush.msra.mxu0 %v1206
          %1227 = vmatpush.msra.mxu0 %v1205
          %1228 = vmatpush.msra.mxu0 %v1204
          %1229 = vmatpush.msra.mxu0 %v1203
          %1230 = vmatpush.msra.mxu0 %v1202
          %1231 = vmatpush.msra.mxu0 %v1201
          %1232 = vmatpush.msra.mxu0 %v1200
          %1233 = vmatmul.f32.gmra.mxu0 %v1199
          %v1234 = vpop.f32.mrf.mxu0
          %v1235 = vadd.f32 %v1216, %v1234
          %1236 = vdwg.mxu0
          %1237 = vst [vmem:[%s824] sm:$0x1] %v1235
        $region140: #{tpu_custom_call.1} parent=111 // pred_fallthru
          _
        %s1238 = sand.u32 %s557, 1
        %s1239 = scalar_lea.sflag [#allocation5], %s1238
        %s1240 = sand.u32 %s557, 1
        %s1241 = scalar_lea.vmem [#allocation12], %s1240
        // Predicated region
        $region141: #{tpu_custom_call.1} parent=111 // pred_check
          %p1242 = pneg %p567
        $region142: #{tpu_custom_call.1} parent=111 // pred_check_branch
          %1244 = sbr.rel (%p1242) target = $region144
        $region143: #{tpu_custom_call.1} parent=111 // pred_region
          %1246 = vsyncadd %s1239, 0
          %s1247 = scalar_lea.hbm %s23, %s44
          %s1249 = sshll.u32 %s1241, 4
          %s1250 = int_to_ptr.vmem [resolvable:$true] %s1249
          %s1251 = sshll.u32 %s1247, 4
          %s1252 = int_to_ptr.hbm [resolvable:$true] %s1251
          %1254 = dma.vmem_to_hbm [thread:$0]  %s1250, 16, %s1252, %s1239
        $region144: #{tpu_custom_call.1} parent=111 // pred_fallthru
          _
      $region112: #{tpu_custom_call.1} parent=5 // pred_fallthru
        _
      %p1255 = scmp.le.s32.totalorder 2, %s35
      // Predicated region
      $region145: #{tpu_custom_call.1} parent=5 // pred_check
        %p1256 = pneg %p1255
      $region146: #{tpu_custom_call.1} parent=5 // pred_check_branch
        %1258 = sbr.rel (%p1256) target = $region148
      $region147: #{tpu_custom_call.1} parent=5 // pred_region
        %s1259 = ssub.s32 %s35, 2
        // Predicated region
        $region149: #{tpu_custom_call.1} parent=147 // pred_check
          %p1260 = pneg %p573
        $region150: #{tpu_custom_call.1} parent=147 // pred_check_branch
          %1262 = sbr.rel (%p1260) target = $region152
        $region151: #{tpu_custom_call.1} parent=147 // pred_region
          %s1263 = sand.u32 %s558, 1
          %s1264 = scalar_lea.sflag [#allocation5], %s1263
          %s1265 = sand.u32 %s558, 1
          %s1266 = scalar_lea.vmem [#allocation12], %s1265
          %1268 = dma.done %s1264, 16
        $region152: #{tpu_custom_call.1} parent=147 // pred_fallthru
          _
      $region148: #{tpu_custom_call.1} parent=5 // pred_fallthru
        _
    $region6: #{tpu_custom_call.1} parent=1 // loop_footer
      %s39 = sadd.s32 1, %s35
    $region7: #{tpu_custom_call.1} parent=1 // loop_footer_branch
      %34 = sbr.rel target = $region3
    $region8: #{tpu_custom_call.1} parent=1 // loop_exit
      _
    %1269 = vsyncpa [#allocation4], 1
    %s1270 = scalar_lea.sflag [#allocation4], 1
    %1271 = vsyncpa %s1270, 1
    %1272 = vsyncpa [#allocation7], 1
    %1273 = vsyncpa [#allocation10], 1
    %1274 = vsyncpa [#allocation5], 1
    %s1275 = scalar_lea.sflag [#allocation5], 1
    %1276 = vsyncpa %s1275, 1

</llo_original>
